<compile_context>
chip_gen: v7x
topology: tpu7x:2x2x1
jax: 0.10.0
libtpu: 0.0.40
codegen_flags: <defaults>
</compile_context>

<pallas_src>
import math

import jax
import jax.numpy as jnp
from jax.experimental import pallas as pl
from jax.experimental.pallas import tpu as pltpu


def gumbel_quantize_kernel(x_ref, g_ref, wp_ref, bp_ref, embT_ref,
                           zq_ref, ind_ref, kl_ref):
    x = x_ref[...]                                        # (NH, THW) f32
    # 1x1 conv along channels == (NE, NH) @ (NH, THW) on the MXU.
    logits = jnp.dot(wp_ref[...], x,
                     preferred_element_type=jnp.float32) + bp_ref[...]

    # Hard gumbel-softmax forward value = one-hot of argmax over codes.
    # argmax is invariant to the positive 1/tau scaling, so tau is dropped.
    g = g_ref[...].astype(jnp.float32)                    # bf16 stream -> f32
    pert = logits + g                                     # (NE, THW)
    m = jnp.max(pert, axis=0, keepdims=True)              # (1, THW)
    n_embed = pert.shape[0]
    code_iota = jax.lax.broadcasted_iota(jnp.int32, pert.shape, 0)
    # first-argmax tie-breaking (matches torch / jnp.argmax): smallest code
    # index attaining the max (f32 sublane min-reduction).
    idx_f = jnp.min(jnp.where(pert == m,
                              code_iota.astype(jnp.float32),
                              jnp.float32(n_embed)),
                    axis=0, keepdims=True)                # (1, THW)
    idx = idx_f.astype(jnp.int32)
    one_hot = (code_iota == idx).astype(jnp.float32)      # (NE, THW)

    # z_q = embed^T @ one_hot -> (ED, THW), written straight back in NCHW.
    zq_ref[...] = jnp.dot(embT_ref[...], one_hot,
                          preferred_element_type=jnp.float32)
    ind_ref[...] = idx                                    # lane-dense int32 row

    # KL(q || uniform) per pixel via log-sum-exp: no full-tile log, no qy
    # array, no epsilon.  sh = logits - max, e = exp(sh), S = sum(e):
    #   sum_i q_i*log(q_i*NE) = (sum_i e_i*sh_i)/S - log(S) + log(NE)
    lm = jnp.max(logits, axis=0, keepdims=True)           # (1, THW)
    sh = logits - lm                                      # (NE, THW)
    e = jnp.exp(sh)                                       # (NE, THW) EUP
    s = jnp.sum(e, axis=0, keepdims=True)                 # (1, THW)
    num = jnp.sum(e * sh, axis=0, keepdims=True)          # (1, THW)
    kl_ref[...] = (num * pl.reciprocal(s, approx=True)
                   - jnp.log(s) + jnp.float32(math.log(n_embed)))


def _choose_tile_hw(hw, batch, target=8192):
    """Pick a lane-aligned spatial tile; return (tile_hw, padded_hw).

    * tile is always a multiple of 128 (no masked vst.msk stores) and H*W is
      padded up to a multiple of the tile, so there is never a giant
      full-extent fallback block or a partial last tile.
    * prefers the largest tile <= target whose padding waste stays small.
    * guarantees >= 2 grid steps when possible so v7x's two TensorCores both
      get work under ("parallel", "parallel") semantics.
    """
    hw128 = ((hw + 127) // 128) * 128
    cap = min(((target + 127) // 128) * 128, hw128)
    tile = 128
    t = cap
    while t >= 128:
        waste = ((hw + t - 1) // t) * t - hw
        if waste <= max(128, hw // 16):
            tile = t
            break
        t -= 128
    hw_pad = ((hw + tile - 1) // tile) * tile
    if batch * (hw_pad // tile) < 2 and tile % 256 == 0:
        tile //= 2
        hw_pad = ((hw + tile - 1) // tile) * tile
    return tile, hw_pad


def gumbel_quantize(z, gumbel_noise, proj_w, proj_b, embed_w,
                    *, temp=1.0, kl_weight=0.0005, target_tile_hw=8192):
    """Forward of GumbelQuantize (hard=True / eval path).

    z:            (B, num_hiddens, H, W) f32 NCHW (same as PyTorch)
    gumbel_noise: (B, n_embed, H, W)     f32 precomputed Gumbel(0,1) draws
    proj_w:       (n_embed, num_hiddens, 1, 1) 1x1 conv weight
    proj_b:       (n_embed,)
    embed_w:      (n_embed, embed_dim)
    `temp` is accepted for API parity; the hard forward value is invariant to it.
    """
    del temp
    B, NH, H, W = z.shape
    NE, ED = embed_w.shape
    HW = H * W
    tile_hw, hw_pad = _choose_tile_hw(HW, B, target_tile_hw)
    n_tiles = hw_pad // tile_hw

    # Free reshapes; only the (tiny) trailing spatial pad ever copies.
    x = z.reshape(B, NH, HW)
    # The gumbel stream dominates input bytes (NE channels vs NH) -> bf16.
    g = gumbel_noise.reshape(B, NE, HW).astype(jnp.bfloat16)
    if hw_pad != HW:
        pad = hw_pad - HW
        x = jnp.pad(x, ((0, 0), (0, 0), (0, pad)))
        g = jnp.pad(g, ((0, 0), (0, 0), (0, pad)))
    wp = proj_w[:, :, 0, 0]            # (NE, NH): native conv-weight layout
    bp = proj_b.reshape(NE, 1)
    embT = embed_w.T                   # (ED, NE): tiny one-time transpose
    # TODO(synk): for production (non bit-repro) paths, generate the Gumbel
    # noise in-kernel via pltpu.prng_seed + pltpu.prng_random_bits and drop
    # this HBM stream entirely (~2x on a mem-bound kernel).

    zq, ind, kl_px = pl.pallas_call(
        gumbel_quantize_kernel,
        out_shape=(
            jax.ShapeDtypeStruct((B, ED, hw_pad), jnp.float32),
            jax.ShapeDtypeStruct((B, 1, hw_pad), jnp.int32),
            jax.ShapeDtypeStruct((B, 1, hw_pad), jnp.float32),
        ),
        grid_spec=pltpu.PrefetchScalarGridSpec(
            num_scalar_prefetch=0,
            grid=(B, n_tiles),
            in_specs=[
                pl.BlockSpec((None, NH, tile_hw), lambda b, t: (b, 0, t)),
                pl.BlockSpec((None, NE, tile_hw), lambda b, t: (b, 0, t)),
                pl.BlockSpec((NE, NH), lambda b, t: (0, 0)),
                pl.BlockSpec((NE, 1), lambda b, t: (0, 0)),
                pl.BlockSpec((ED, NE), lambda b, t: (0, 0)),
            ],
            out_specs=[
                pl.BlockSpec((None, ED, tile_hw), lambda b, t: (b, 0, t)),
                pl.BlockSpec((None, 1, tile_hw), lambda b, t: (b, 0, t)),
                pl.BlockSpec((None, 1, tile_hw), lambda b, t: (b, 0, t)),
            ],
        ),
        compiler_params=pltpu.CompilerParams(
            dimension_semantics=("parallel", "parallel"),
            vmem_limit_bytes=48 * 1024 * 1024),
    )(x, g, wp, bp, embT)

    z_q = zq[:, :, :HW].reshape(B, ED, H, W)
    ind_out = ind[:, 0, :HW].reshape(B, H, W)
    diff = jnp.sum(kl_px[:, 0, :HW]) * (kl_weight / (B * HW))
    # matches the PyTorch use_vqinterface=True return: (z_q, diff, (None, None, ind))
    return z_q, diff, (None, None, ind_out)


def _reference(z, gumbel_noise, proj_w, proj_b, embed_w, temp, kl_weight):
    """Pure-JAX reference mirroring the PyTorch forward (hard=True)."""
    NE = embed_w.shape[0]
    logits = jnp.einsum('bchw,nc->bnhw', z, proj_w[:, :, 0, 0]) \
        + proj_b[None, :, None, None]
    pert = (logits + gumbel_noise) / temp
    ind = jnp.argmax(pert, axis=1)
    one_hot = jax.nn.one_hot(ind, NE, axis=1, dtype=jnp.float32)
    z_q = jnp.einsum('bnhw,nd->bdhw', one_hot, embed_w)
    qy = jax.nn.softmax(logits, axis=1)
    diff = kl_weight * jnp.mean(jnp.sum(qy * jnp.log(qy * NE + 1e-10), axis=1))
    return z_q, diff, ind


if __name__ == "__main__":
    # module hyperparams (small, but TPU-friendly: n_embed multiple of 128)
    num_hiddens, embedding_dim, n_embed = 32, 32, 128
    temp_init, kl_weight = 1.0, 0.0005
    B, H, W = 2, 16, 16

    key = jax.random.PRNGKey(0)
    kz, kg, kw, kb, ke = jax.random.split(key, 5)

    z = jax.random.normal(kz, (B, num_hiddens, H, W), dtype=jnp.float32)
    # gumbel noise for F.gumbel_softmax, precomputed deterministically
    gumbel_noise = jax.random.gumbel(kg, (B, n_embed, H, W), dtype=jnp.float32)

    # deterministic synthetic parameters (Conv2d 1x1 weight/bias + Embedding)
    proj_w = jax.random.normal(kw, (n_embed, num_hiddens, 1, 1), jnp.float32) * 0.5
    proj_b = jax.random.normal(kb, (n_embed,), jnp.float32) * 0.5
    embed_w = jax.random.normal(ke, (n_embed, embedding_dim), jnp.float32)

    z_q, diff, (_, _, ind) = jax.jit(
        lambda *a: gumbel_quantize(*a, temp=temp_init, kl_weight=kl_weight)
    )(z, gumbel_noise, proj_w, proj_b, embed_w)
    jax.block_until_ready((z_q, diff, ind))

    # correctness check against pure-JAX reference; the reference consumes the
    # same bf16-quantized noise values the kernel streams, so ind/z_q match.
    noise_bf16 = gumbel_noise.astype(jnp.bfloat16).astype(jnp.float32)
    z_q_r, diff_r, ind_r = _reference(z, noise_bf16, proj_w, proj_b, embed_w,
                                      temp_init, kl_weight)
    assert z_q.shape == (B, embedding_dim, H, W)
    assert ind.shape == (B, H, W)
    assert jnp.allclose(z_q, z_q_r, atol=1e-5), "z_q mismatch"
    assert jnp.allclose(diff, diff_r, rtol=1e-3, atol=1e-5), "diff mismatch"
    assert jnp.all(ind == ind_r), "ind mismatch"

    print("KERNEL_OK")
</pallas_src>

<mosaic_0001>
module attributes {stable_mosaic.version = 11 : i64} {
  func.func @gumbel_quantize_kernel(%arg0: i32, %arg1: i32, %arg2: memref<1x32x256xf32, #tpu.memory_space<vmem>>, %arg3: memref<1x128x256xbf16, #tpu.memory_space<vmem>>, %arg4: memref<128x32xf32, #tpu.memory_space<vmem>>, %arg5: memref<128x1xf32, #tpu.memory_space<vmem>>, %arg6: memref<32x128xf32, #tpu.memory_space<vmem>>, %arg7: memref<1x32x256xf32, #tpu.memory_space<vmem>>, %arg8: memref<1x1x256xi32, #tpu.memory_space<vmem>>, %arg9: memref<1x1x256xf32, #tpu.memory_space<vmem>>) attributes {dimension_semantics = [#tpu.dimension_semantics<parallel>, #tpu.dimension_semantics<parallel>], iteration_bounds = array<i64: 2, 1>, scalar_prefetch = 0 : i64, scratch_operands = 0 : i64, tpu.core_type = #tpu.core_type<tc>, window_params = [{transform_indices = @transform_0, window_bounds = array<i64: 1, 32, 256>}, {transform_indices = @transform_1, window_bounds = array<i64: 1, 128, 256>}, {pipeline_mode = #tpu.pipeline_mode<synchronous>, transform_indices = @transform_2, window_bounds = array<i64: 128, 32>}, {pipeline_mode = #tpu.pipeline_mode<synchronous>, transform_indices = @transform_3, window_bounds = array<i64: 128, 1>}, {pipeline_mode = #tpu.pipeline_mode<synchronous>, transform_indices = @transform_4, window_bounds = array<i64: 32, 128>}, {transform_indices = @transform_5, window_bounds = array<i64: 1, 32, 256>}, {transform_indices = @transform_6, window_bounds = array<i64: 1, 1, 256>}, {transform_indices = @transform_7, window_bounds = array<i64: 1, 1, 256>}]} {
    %c0 = arith.constant 0 : index
    %c0_0 = arith.constant 0 : index
    %c0_1 = arith.constant 0 : index
    %0 = vector.load %arg2[%c0, %c0_0, %c0_1] : memref<1x32x256xf32, #tpu.memory_space<vmem>>, vector<1x32x256xf32>
    %1 = vector.shape_cast %0 : vector<1x32x256xf32> to vector<32x256xf32>
    %c0_2 = arith.constant 0 : index
    %c0_3 = arith.constant 0 : index
    %2 = vector.load %arg4[%c0_2, %c0_3] : memref<128x32xf32, #tpu.memory_space<vmem>>, vector<128x32xf32>
    %cst = arith.constant dense<0.000000e+00> : vector<128x256xf32>
    %3 = tpu.matmul %2, %1, %cst {dimension_numbers = #tpu.dot_dimension_numbers<[1], [0], [0], [1], [0, 0, 1, 1], [], []>} : vector<128x32xf32>, vector<32x256xf32>, vector<128x256xf32> -> vector<128x256xf32>
    %c0_4 = arith.constant 0 : index
    %c0_5 = arith.constant 0 : index
    %4 = vector.load %arg5[%c0_4, %c0_5] : memref<128x1xf32, #tpu.memory_space<vmem>>, vector<128x1xf32>
    %5 = vector.broadcast %4 : vector<128x1xf32> to vector<128x256xf32>
    %6 = arith.addf %3, %5 : vector<128x256xf32>
    %c0_6 = arith.constant 0 : index
    %c0_7 = arith.constant 0 : index
    %c0_8 = arith.constant 0 : index
    %7 = vector.load %arg3[%c0_6, %c0_7, %c0_8] : memref<1x128x256xbf16, #tpu.memory_space<vmem>>, vector<1x128x256xbf16>
    %8 = vector.shape_cast %7 : vector<1x128x256xbf16> to vector<128x256xbf16>
    %9 = arith.extf %8 : vector<128x256xbf16> to vector<128x256xf32>
    %10 = arith.addf %6, %9 : vector<128x256xf32>
    %cst_9 = arith.constant dense<0xFF800000> : vector<256xf32>
    %11 = vector.multi_reduction <maximumf>, %10, %cst_9 [0] : vector<128x256xf32> to vector<256xf32>
    %12 = vector.shape_cast %11 : vector<256xf32> to vector<1x256xf32>
    %13 = tpu.iota {dimensions = array<i32: 0>} : vector<128x256xi32>
    %14 = vector.broadcast %12 : vector<1x256xf32> to vector<128x256xf32>
    %15 = arith.cmpf oeq, %10, %14 : vector<128x256xf32>
    %16 = arith.sitofp %13 : vector<128x256xi32> to vector<128x256xf32>
    %cst_10 = arith.constant 1.280000e+02 : f32
    %17 = vector.broadcast %cst_10 : f32 to vector<128x256xf32>
    %18 = arith.select %15, %16, %17 : vector<128x256xi1>, vector<128x256xf32>
    %cst_11 = arith.constant dense<0x7F800000> : vector<256xf32>
    %19 = vector.multi_reduction <minimumf>, %18, %cst_11 [0] : vector<128x256xf32> to vector<256xf32>
    %20 = vector.shape_cast %19 : vector<256xf32> to vector<1x256xf32>
    %21 = arith.fptosi %20 : vector<1x256xf32> to vector<1x256xi32>
    %22 = vector.broadcast %21 : vector<1x256xi32> to vector<128x256xi32>
    %23 = arith.cmpi eq, %13, %22 : vector<128x256xi32>
    %24 = arith.extui %23 : vector<128x256xi1> to vector<128x256xi32>
    %25 = arith.sitofp %24 : vector<128x256xi32> to vector<128x256xf32>
    %c0_12 = arith.constant 0 : index
    %c0_13 = arith.constant 0 : index
    %26 = vector.load %arg6[%c0_12, %c0_13] : memref<32x128xf32, #tpu.memory_space<vmem>>, vector<32x128xf32>
    %cst_14 = arith.constant dense<0.000000e+00> : vector<32x256xf32>
    %27 = tpu.matmul %26, %25, %cst_14 {dimension_numbers = #tpu.dot_dimension_numbers<[1], [0], [0], [1], [0, 0, 1, 1], [], []>} : vector<32x128xf32>, vector<128x256xf32>, vector<32x256xf32> -> vector<32x256xf32>
    %c0_15 = arith.constant 0 : index
    %c0_16 = arith.constant 0 : index
    %c0_17 = arith.constant 0 : index
    %28 = vector.load %arg7[%c0_15, %c0_16, %c0_17] : memref<1x32x256xf32, #tpu.memory_space<vmem>>, vector<1x32x256xf32>
    %29 = vector.shape_cast %28 : vector<1x32x256xf32> to vector<32x256xf32>
    %30 = vector.shape_cast %27 : vector<32x256xf32> to vector<1x32x256xf32>
    tpu.vector_store %arg7[%c0_15, %c0_16, %c0_17], %30 {strides = array<i32>} : memref<1x32x256xf32, #tpu.memory_space<vmem>>, vector<1x32x256xf32>,
    %c0_18 = arith.constant 0 : index
    %c0_19 = arith.constant 0 : index
    %c0_20 = arith.constant 0 : index
    %31 = vector.load %arg8[%c0_18, %c0_19, %c0_20] : memref<1x1x256xi32, #tpu.memory_space<vmem>>, vector<1x1x256xi32>
    %32 = vector.shape_cast %31 : vector<1x1x256xi32> to vector<1x256xi32>
    %33 = vector.shape_cast %21 : vector<1x256xi32> to vector<1x1x256xi32>
    tpu.vector_store %arg8[%c0_18, %c0_19, %c0_20], %33 {strides = array<i32>} : memref<1x1x256xi32, #tpu.memory_space<vmem>>, vector<1x1x256xi32>,
    %cst_21 = arith.constant dense<0xFF800000> : vector<256xf32>
    %34 = vector.multi_reduction <maximumf>, %6, %cst_21 [0] : vector<128x256xf32> to vector<256xf32>
    %35 = vector.shape_cast %34 : vector<256xf32> to vector<1x256xf32>
    %36 = vector.broadcast %35 : vector<1x256xf32> to vector<128x256xf32>
    %37 = arith.subf %6, %36 : vector<128x256xf32>
    %38 = math.exp %37 : vector<128x256xf32>
    %cst_22 = arith.constant dense<0.000000e+00> : vector<256xf32>
    %39 = vector.multi_reduction <add>, %38, %cst_22 [0] : vector<128x256xf32> to vector<256xf32>
    %40 = vector.shape_cast %39 : vector<256xf32> to vector<1x256xf32>
    %41 = arith.mulf %38, %37 : vector<128x256xf32>
    %cst_23 = arith.constant dense<0.000000e+00> : vector<256xf32>
    %42 = vector.multi_reduction <add>, %41, %cst_23 [0] : vector<128x256xf32> to vector<256xf32>
    %43 = vector.shape_cast %42 : vector<256xf32> to vector<1x256xf32>
    %44 = tpu.reciprocal %40 {approx = true} : vector<1x256xf32> -> vector<1x256xf32>
    %45 = arith.mulf %43, %44 : vector<1x256xf32>
    %46 = math.log %40 : vector<1x256xf32>
    %47 = arith.subf %45, %46 : vector<1x256xf32>
    %cst_24 = arith.constant 4.85203028 : f32
    %48 = vector.broadcast %cst_24 : f32 to vector<1x256xf32>
    %49 = arith.addf %47, %48 : vector<1x256xf32>
    %c0_25 = arith.constant 0 : index
    %c0_26 = arith.constant 0 : index
    %c0_27 = arith.constant 0 : index
    %50 = vector.load %arg9[%c0_25, %c0_26, %c0_27] : memref<1x1x256xf32, #tpu.memory_space<vmem>>, vector<1x1x256xf32>
    %51 = vector.shape_cast %50 : vector<1x1x256xf32> to vector<1x256xf32>
    %52 = vector.shape_cast %49 : vector<1x256xf32> to vector<1x1x256xf32>
    tpu.vector_store %arg9[%c0_25, %c0_26, %c0_27], %52 {strides = array<i32>} : memref<1x1x256xf32, #tpu.memory_space<vmem>>, vector<1x1x256xf32>,
    return
  }
  func.func @transform_0(%arg0: i32, %arg1: i32) -> (i32, i32, i32) {
    %c0_i32 = arith.constant 0 : i32
    %c0_i32_0 = arith.constant 0 : i32
    return %arg0, %c0_i32, %arg1 : i32, i32, i32
  }
  func.func @transform_1(%arg0: i32, %arg1: i32) -> (i32, i32, i32) {
    %c0_i32 = arith.constant 0 : i32
    %c0_i32_0 = arith.constant 0 : i32
    return %arg0, %c0_i32, %arg1 : i32, i32, i32
  }
  func.func @transform_2(%arg0: i32, %arg1: i32) -> (i32, i32) {
    %c0_i32 = arith.constant 0 : i32
    %c0_i32_0 = arith.constant 0 : i32
    %c0_i32_1 = arith.constant 0 : i32
    return %c0_i32, %c0_i32_0 : i32, i32
  }
  func.func @transform_3(%arg0: i32, %arg1: i32) -> (i32, i32) {
    %c0_i32 = arith.constant 0 : i32
    %c0_i32_0 = arith.constant 0 : i32
    %c0_i32_1 = arith.constant 0 : i32
    return %c0_i32, %c0_i32_0 : i32, i32
  }
  func.func @transform_4(%arg0: i32, %arg1: i32) -> (i32, i32) {
    %c0_i32 = arith.constant 0 : i32
    %c0_i32_0 = arith.constant 0 : i32
    %c0_i32_1 = arith.constant 0 : i32
    return %c0_i32, %c0_i32_0 : i32, i32
  }
  func.func @transform_5(%arg0: i32, %arg1: i32) -> (i32, i32, i32) {
    %c0_i32 = arith.constant 0 : i32
    %c0_i32_0 = arith.constant 0 : i32
    return %arg0, %c0_i32, %arg1 : i32, i32, i32
  }
  func.func @transform_6(%arg0: i32, %arg1: i32) -> (i32, i32, i32) {
    %c0_i32 = arith.constant 0 : i32
    %c0_i32_0 = arith.constant 0 : i32
    return %arg0, %c0_i32, %arg1 : i32, i32, i32
  }
  func.func @transform_7(%arg0: i32, %arg1: i32) -> (i32, i32, i32) {
    %c0_i32 = arith.constant 0 : i32
    %c0_i32_0 = arith.constant 0 : i32
    return %arg0, %c0_i32, %arg1 : i32, i32, i32
  }
}

</mosaic_0001>

<llo_original>
// kernel: squeeze.4
$region0: #{squeeze.4}
  %s0 = inlined_call_operand.vmem [shape: s32[2,256], index: 0, kind: input, shape index: {}]
  %s1 = inlined_call_operand.hbm [shape: s32[2,16,16], index: 1, kind: output, shape index: {}]
  $region1: #{squeeze.4} parent=0
    #allocation0 [shape = 'u8[16384]{0}', space=vmem, size = 0x4000, scoped, tag = 'operand span for operand 1']
    #allocation1 [shape = 's32[1]{0}', space=sflag, size = 0x4, scoped, tag = 'scoped memory for squeeze.4']
    #allocation2 [shape = 'u8[8192]{0}', space=vmem, size = 0x2000, scoped, tag = 'scoped mem for input reshape']
    %2 = vsyncpa [#allocation1], 0
    %s4 = sshllo.u32 0, 2
    %s5 = scalar_lea.vmem %s0, 2
    %v6 = vld [vmem:[%s5] sm:%s4]
    %s7 = scalar_lea.vmem [#allocation2], 8
    %8 = vst [vmem:[%s7] sm:%s4] %v6
    %v9 = vld [vmem:[%s0] sm:%s4]
    %10 = vst [vmem:[#allocation2] sm:%s4] %v9
    %v11 = vld [vmem:[#allocation2] sm:$0x3]
    %vm12 = vcmask 130048
    %13 = vst.msk [vmem:[#allocation0] ss:$16 sm:$0x3] %vm12, %v11
    %s14 = scalar_lea.vmem [#allocation2], 8
    %v15 = vld [vmem:[%s14] sm:$0x3]
    %vm16 = vcmask 130048
    %s17 = scalar_lea.vmem [#allocation0], 8
    %18 = vst.msk [vmem:[%s17] ss:$16 sm:$0x3] %vm16, %v15
    %v19 = vld.sshfl [vmem:[#allocation2] sm:$0xff pattern:$0x99999180]
    %20 = vrot.lane.b32.xlu0 %v19, 112
    %v21 = vpop.permute.xlu0 %20
    %vm22 = vcmask 130048
    %s23 = scalar_lea.vmem [#allocation0], 1
    %24 = vst.msk [vmem:[%s23] ss:$8 sm:$0xf] %vm22, %v21
    %v25 = vld.sshfl [vmem:[#allocation2] sm:$0xff pattern:$0x99999180]
    %26 = vrot.lane.b32.xlu0 %v25, 96
    %v27 = vpop.permute.xlu0 %26
    %vm28 = vcmask 130048
    %s29 = scalar_lea.vmem [#allocation0], 2
    %30 = vst.msk [vmem:[%s29] ss:$8 sm:$0xf] %vm28, %v27
    %v31 = vld.sshfl [vmem:[#allocation2] sm:$0xff pattern:$0x99999180]
    %32 = vrot.lane.b32.xlu0 %v31, 80
    %v33 = vpop.permute.xlu0 %32
    %vm34 = vcmask 130048
    %s35 = scalar_lea.vmem [#allocation0], 3
    %36 = vst.msk [vmem:[%s35] ss:$8 sm:$0xf] %vm34, %v33
    %v37 = vld.sshfl [vmem:[#allocation2] sm:$0xff pattern:$0x99999180]
    %38 = vrot.lane.b32.xlu0 %v37, 64
    %v39 = vpop.permute.xlu0 %38
    %vm40 = vcmask 130048
    %s41 = scalar_lea.vmem [#allocation0], 4
    %42 = vst.msk [vmem:[%s41] ss:$8 sm:$0xf] %vm40, %v39
    %v43 = vld.sshfl [vmem:[#allocation2] sm:$0xff pattern:$0x99999180]
    %44 = vrot.lane.b32.xlu0 %v43, 48
    %v45 = vpop.permute.xlu0 %44
    %vm46 = vcmask 130048
    %s47 = scalar_lea.vmem [#allocation0], 5
    %48 = vst.msk [vmem:[%s47] ss:$8 sm:$0xf] %vm46, %v45
    %v49 = vld.sshfl [vmem:[#allocation2] sm:$0xff pattern:$0x99999180]
    %50 = vrot.lane.b32.xlu0 %v49, 32
    %v51 = vpop.permute.xlu0 %50
    %vm52 = vcmask 130048
    %s53 = scalar_lea.vmem [#allocation0], 6
    %54 = vst.msk [vmem:[%s53] ss:$8 sm:$0xf] %vm52, %v51
    %v55 = vld.sshfl [vmem:[#allocation2] sm:$0xff pattern:$0x99999180]
    %56 = vrot.lane.b32.xlu0 %v55, 16
    %v57 = vpop.permute.xlu0 %56
    %vm58 = vcmask 130048
    %s59 = scalar_lea.vmem [#allocation0], 7
    %60 = vst.msk [vmem:[%s59] ss:$8 sm:$0xf] %vm58, %v57
    %s62 = ssub.s32 512, 512
    %63 = vsyncadd [#allocation1], %s62
    %s65 = sshll.u32 [#allocation0], 4
    %s66 = int_to_ptr.vmem [resolvable:$true] %s65
    %68 = dma.vmem_to_hbm [thread:$0]  %s66, 512, %s1, [#allocation1]
    %69 = dma.done [#allocation1], 512
    %70 = vsyncpa [#allocation1], 1

// kernel: _lambda_.1
$region0: #{_lambda_.1}
  #allocation0 [shape = 'u32[]', space=smem, size = 0x4, offset = 0x4, fixed_abs, tag = 'smem constant byte address 0x4 - core index']
  #allocation1 [shape = 'u32[144,128]{1,0:T(1,128)}', space=vmem, size = 0x12000, scoped, tag = 'internal scratch']
  %s0 = inlined_call_operand.vmem [shape: f32[2,32,256], index: 0, kind: input, shape index: {}]
  %s1 = inlined_call_operand.vmem [shape: bf16[2,128,256], index: 1, kind: input, shape index: {}]
  %s2 = inlined_call_operand.vmem [shape: f32[128,32], index: 2, kind: input, shape index: {}]
  %s3 = inlined_call_operand.vmem [shape: f32[128,1], index: 3, kind: input, shape index: {}]
  %s4 = inlined_call_operand.vmem [shape: f32[32,128], index: 4, kind: input, shape index: {}]
  %s5 = inlined_call_operand.vmem [shape: f32[2,32,256], index: 5, kind: output, shape index: {0}]
  %s6 = inlined_call_operand.vmem [shape: s32[2,1,256], index: 6, kind: output, shape index: {1}]
  %s7 = inlined_call_operand.vmem [shape: f32[2,1,256], index: 7, kind: output, shape index: {2}]
  %8 = xla_tuple %s5, %s6, %s7
  %s9 = sld [smem:[#allocation0]]
  $region69: #{_lambda_.1} parent=0
    _
  %s11 = ssub.s32 1, %s9
  %s12 = scalar_select 0, %s11, %s9
  loop: start=0, step=1, limit=4
  $region2: #{_lambda_.1} parent=0 // loop_pre_header
    _
  $region3: #{_lambda_.1} parent=0 // loop_header
    %s14 = sphi 0, %s18
    %p15 = scmp.ge.s32.totalorder %s14, 4
    %s21 = sphi 0, %s33
    %s22 = sphi 0, %s29
    %s23 = sphi 0, %s21
    %s24 = sphi 0, %s22
    %s25 = sphi 0, %s23
    %s26 = sphi 0, %s24
    %s38 = sphi 0, %s40
    %s41 = sphi 0, %s38
    %s42 = sphi 0, %s41
    %s58 = sphi 0, %s42
    %s66 = sphi 0, %s68
    %s69 = sphi 0, %s66
    %s70 = sphi 0, %s69
    %s86 = sphi 0, %s70
    %s90 = sphi 0, %s90
    %s92 = sphi 0, %s90
    %s93 = sphi 0, %s92
    %s107 = sphi 0, %s93
    %s111 = sphi 0, %s111
    %s113 = sphi 0, %s111
    %s114 = sphi 0, %s113
    %s128 = sphi 0, %s114
    %s132 = sphi 0, %s132
    %s134 = sphi 0, %s132
    %s135 = sphi 0, %s134
    %s149 = sphi 0, %s135
    %s157 = sphi 0, %s159
    %s160 = sphi 0, %s157
    %s161 = sphi 0, %s160
    %s177 = sphi 0, %s161
    %s185 = sphi 0, %s187
    %s188 = sphi 0, %s185
    %s189 = sphi 0, %s188
    %s205 = sphi 0, %s189
    %s213 = sphi 0, %s215
    %s216 = sphi 0, %s213
    %s217 = sphi 0, %s216
    %s233 = sphi 0, %s217
  $region4: #{_lambda_.1} parent=0 // loop_header_branch
    %17 = sbr.rel (%p15) target = $region8
  $region5: #{_lambda_.1} parent=0 // loop_body
    %s19 = ssub.s32 %s14, 1
    %s20 = ssub.s32 %s14, 2
    %s27 = sadd.s32 1, %s22
    %p28 = scmp.ge.s32.totalorder %s27, 1
    %s29 = scalar_select %p28, 0, %s27
    %s30 = sadd.s32 1, %s21
    %s31 = scalar_select %p28, %s30, %s21
    %p32 = scmp.ge.s32.totalorder %s31, 2
    %s33 = scalar_select %p32, 0, %s31
    %s34 = ssub.s32 %s21, %s33
    %s35 = ssub.s32 %s22, %s29
    %s36 = sor.u32 %s34, %s35
    %p37 = scmp.eq.s32.totalorder %s36, 0
    %s39 = sadd.s32 %s38, 1
    %s40 = scalar_select %p37, %s38, %s39
    %p43 = pneg %p37
    %p44 = scmp.eq.s32.totalorder %s14, 1
    %p45 = por %p43, %p44
    %p46 = scmp.ne.s32.totalorder %s38, %s41
    %p47 = scmp.eq.s32.totalorder %s14, 0
    %p48 = por %p46, %p47
    %p49 = scmp.ne.s32.totalorder %s38, %s41
    %p50 = scmp.eq.s32.totalorder %s19, 1
    %p51 = por %p49, %p50
    %p52 = scmp.ne.s32.totalorder %s41, %s42
    %p53 = scmp.eq.s32.totalorder %s19, 0
    %p54 = por %p52, %p53
    %p55 = scmp.ne.s32.totalorder %s41, %s42
    %p56 = scmp.eq.s32.totalorder %s20, 1
    %p57 = por %p55, %p56
    %p59 = scmp.ne.s32.totalorder %s42, %s58
    %p60 = scmp.eq.s32.totalorder %s20, 0
    %p61 = por %p59, %p60
    %s62 = ssub.s32 %s21, %s33
    %s63 = ssub.s32 %s22, %s29
    %s64 = sor.u32 %s62, %s63
    %p65 = scmp.eq.s32.totalorder %s64, 0
    %s67 = sadd.s32 %s66, 1
    %s68 = scalar_select %p65, %s66, %s67
    %p71 = pneg %p65
    %p72 = scmp.eq.s32.totalorder %s14, 1
    %p73 = por %p71, %p72
    %p74 = scmp.ne.s32.totalorder %s66, %s69
    %p75 = scmp.eq.s32.totalorder %s14, 0
    %p76 = por %p74, %p75
    %p77 = scmp.ne.s32.totalorder %s66, %s69
    %p78 = scmp.eq.s32.totalorder %s19, 1
    %p79 = por %p77, %p78
    %p80 = scmp.ne.s32.totalorder %s69, %s70
    %p81 = scmp.eq.s32.totalorder %s19, 0
    %p82 = por %p80, %p81
    %p83 = scmp.ne.s32.totalorder %s69, %s70
    %p84 = scmp.eq.s32.totalorder %s20, 1
    %p85 = por %p83, %p84
    %p87 = scmp.ne.s32.totalorder %s70, %s86
    %p88 = scmp.eq.s32.totalorder %s20, 0
    %p89 = por %p87, %p88
    %s91 = sadd.s32 %s90, 1
    %p94 = scmp.eq.s32.totalorder %s14, 1
    %p95 = scmp.ne.s32.totalorder %s90, %s92
    %p96 = scmp.eq.s32.totalorder %s14, 0
    %p97 = por %p95, %p96
    %p98 = scmp.ne.s32.totalorder %s90, %s92
    %p99 = scmp.eq.s32.totalorder %s19, 1
    %p100 = por %p98, %p99
    %p101 = scmp.ne.s32.totalorder %s92, %s93
    %p102 = scmp.eq.s32.totalorder %s19, 0
    %p103 = por %p101, %p102
    %p104 = scmp.ne.s32.totalorder %s92, %s93
    %p105 = scmp.eq.s32.totalorder %s20, 1
    %p106 = por %p104, %p105
    %p108 = scmp.ne.s32.totalorder %s93, %s107
    %p109 = scmp.eq.s32.totalorder %s20, 0
    %p110 = por %p108, %p109
    %s112 = sadd.s32 %s111, 1
    %p115 = scmp.eq.s32.totalorder %s14, 1
    %p116 = scmp.ne.s32.totalorder %s111, %s113
    %p117 = scmp.eq.s32.totalorder %s14, 0
    %p118 = por %p116, %p117
    %p119 = scmp.ne.s32.totalorder %s111, %s113
    %p120 = scmp.eq.s32.totalorder %s19, 1
    %p121 = por %p119, %p120
    %p122 = scmp.ne.s32.totalorder %s113, %s114
    %p123 = scmp.eq.s32.totalorder %s19, 0
    %p124 = por %p122, %p123
    %p125 = scmp.ne.s32.totalorder %s113, %s114
    %p126 = scmp.eq.s32.totalorder %s20, 1
    %p127 = por %p125, %p126
    %p129 = scmp.ne.s32.totalorder %s114, %s128
    %p130 = scmp.eq.s32.totalorder %s20, 0
    %p131 = por %p129, %p130
    %s133 = sadd.s32 %s132, 1
    %p136 = scmp.eq.s32.totalorder %s14, 1
    %p137 = scmp.ne.s32.totalorder %s132, %s134
    %p138 = scmp.eq.s32.totalorder %s14, 0
    %p139 = por %p137, %p138
    %p140 = scmp.ne.s32.totalorder %s132, %s134
    %p141 = scmp.eq.s32.totalorder %s19, 1
    %p142 = por %p140, %p141
    %p143 = scmp.ne.s32.totalorder %s134, %s135
    %p144 = scmp.eq.s32.totalorder %s19, 0
    %p145 = por %p143, %p144
    %p146 = scmp.ne.s32.totalorder %s134, %s135
    %p147 = scmp.eq.s32.totalorder %s20, 1
    %p148 = por %p146, %p147
    %p150 = scmp.ne.s32.totalorder %s135, %s149
    %p151 = scmp.eq.s32.totalorder %s20, 0
    %p152 = por %p150, %p151
    %s153 = ssub.s32 %s21, %s33
    %s154 = ssub.s32 %s22, %s29
    %s155 = sor.u32 %s153, %s154
    %p156 = scmp.eq.s32.totalorder %s155, 0
    %s158 = sadd.s32 %s157, 1
    %s159 = scalar_select %p156, %s157, %s158
    %p162 = pneg %p156
    %p163 = scmp.eq.s32.totalorder %s14, 1
    %p164 = por %p162, %p163
    %p165 = scmp.ne.s32.totalorder %s157, %s160
    %p166 = scmp.eq.s32.totalorder %s14, 0
    %p167 = por %p165, %p166
    %p168 = scmp.ne.s32.totalorder %s157, %s160
    %p169 = scmp.eq.s32.totalorder %s19, 1
    %p170 = por %p168, %p169
    %p171 = scmp.ne.s32.totalorder %s160, %s161
    %p172 = scmp.eq.s32.totalorder %s19, 0
    %p173 = por %p171, %p172
    %p174 = scmp.ne.s32.totalorder %s160, %s161
    %p175 = scmp.eq.s32.totalorder %s20, 1
    %p176 = por %p174, %p175
    %p178 = scmp.ne.s32.totalorder %s161, %s177
    %p179 = scmp.eq.s32.totalorder %s20, 0
    %p180 = por %p178, %p179
    %s181 = ssub.s32 %s21, %s33
    %s182 = ssub.s32 %s22, %s29
    %s183 = sor.u32 %s181, %s182
    %p184 = scmp.eq.s32.totalorder %s183, 0
    %s186 = sadd.s32 %s185, 1
    %s187 = scalar_select %p184, %s185, %s186
    %p190 = pneg %p184
    %p191 = scmp.eq.s32.totalorder %s14, 1
    %p192 = por %p190, %p191
    %p193 = scmp.ne.s32.totalorder %s185, %s188
    %p194 = scmp.eq.s32.totalorder %s14, 0
    %p195 = por %p193, %p194
    %p196 = scmp.ne.s32.totalorder %s185, %s188
    %p197 = scmp.eq.s32.totalorder %s19, 1
    %p198 = por %p196, %p197
    %p199 = scmp.ne.s32.totalorder %s188, %s189
    %p200 = scmp.eq.s32.totalorder %s19, 0
    %p201 = por %p199, %p200
    %p202 = scmp.ne.s32.totalorder %s188, %s189
    %p203 = scmp.eq.s32.totalorder %s20, 1
    %p204 = por %p202, %p203
    %p206 = scmp.ne.s32.totalorder %s189, %s205
    %p207 = scmp.eq.s32.totalorder %s20, 0
    %p208 = por %p206, %p207
    %s209 = ssub.s32 %s21, %s33
    %s210 = ssub.s32 %s22, %s29
    %s211 = sor.u32 %s209, %s210
    %p212 = scmp.eq.s32.totalorder %s211, 0
    %s214 = sadd.s32 %s213, 1
    %s215 = scalar_select %p212, %s213, %s214
    %p218 = pneg %p212
    %p219 = scmp.eq.s32.totalorder %s14, 1
    %p220 = por %p218, %p219
    %p221 = scmp.ne.s32.totalorder %s213, %s216
    %p222 = scmp.eq.s32.totalorder %s14, 0
    %p223 = por %p221, %p222
    %p224 = scmp.ne.s32.totalorder %s213, %s216
    %p225 = scmp.eq.s32.totalorder %s19, 1
    %p226 = por %p224, %p225
    %p227 = scmp.ne.s32.totalorder %s216, %s217
    %p228 = scmp.eq.s32.totalorder %s19, 0
    %p229 = por %p227, %p228
    %p230 = scmp.ne.s32.totalorder %s216, %s217
    %p231 = scmp.eq.s32.totalorder %s20, 1
    %p232 = por %p230, %p231
    %p234 = scmp.ne.s32.totalorder %s217, %s233
    %p235 = scmp.eq.s32.totalorder %s20, 0
    %p236 = por %p234, %p235
    %p237 = scmp.le.s32.totalorder 1, %s14
    %p238 = scmp.lt.s32.totalorder %s14, 3
    %p239 = pnand %p237, %p238
    %p240 = pneg %p239
    // Predicated region
    $region9: #{_lambda_.1} parent=5 // pred_check
      _
    $region10: #{_lambda_.1} parent=5 // pred_check_branch
      %242 = sbr.rel (%p239) target = $region12
    $region11: #{_lambda_.1} parent=5 // pred_region
      %s243 = ssub.s32 %s14, 1
      // Predicated region
      $region13: #{_lambda_.1} parent=11 // pred_check
        %p244 = pneg %p103
      $region14: #{_lambda_.1} parent=11 // pred_check_branch
        %246 = sbr.rel (%p244) target = $region16
      $region15: #{_lambda_.1} parent=11 // pred_region
        _
      $region16: #{_lambda_.1} parent=11 // pred_fallthru
        _
      // Predicated region
      $region17: #{_lambda_.1} parent=11 // pred_check
        %p247 = pneg %p124
      $region18: #{_lambda_.1} parent=11 // pred_check_branch
        %249 = sbr.rel (%p247) target = $region20
      $region19: #{_lambda_.1} parent=11 // pred_region
        _
      $region20: #{_lambda_.1} parent=11 // pred_fallthru
        _
      // Predicated region
      $region21: #{_lambda_.1} parent=11 // pred_check
        %p250 = pneg %p145
      $region22: #{_lambda_.1} parent=11 // pred_check_branch
        %252 = sbr.rel (%p250) target = $region24
      $region23: #{_lambda_.1} parent=11 // pred_region
        _
      $region24: #{_lambda_.1} parent=11 // pred_fallthru
        _
    $region12: #{_lambda_.1} parent=5 // pred_fallthru
      _
    %p253 = scmp.lt.s32.totalorder %s14, 2
    // Predicated region
    $region25: #{_lambda_.1} parent=5 // pred_check
      %p254 = pneg %p253
    $region26: #{_lambda_.1} parent=5 // pred_check_branch
      %256 = sbr.rel (%p254) target = $region28
    $region27: #{_lambda_.1} parent=5 // pred_region
      // Predicated region
      $region29: #{_lambda_.1} parent=27 // pred_check
        %p257 = pneg %p48
      $region30: #{_lambda_.1} parent=27 // pred_check_branch
        %259 = sbr.rel (%p257) target = $region32
      $region31: #{_lambda_.1} parent=27 // pred_region
        %s260 = smul.u32 2, %s22
        %p261 = scmp.lt.s32.totalorder %s21, 1
        %s262 = scalar_select %p261, %s21, 1
        %p263 = scmp.lt.s32.totalorder %s260, 1
        %s264 = scalar_select %p263, %s260, 1
        %s265 = smul.addr %s262, 8
        %s266 = sadd.s32 %s264, %s265
        %s267 = smul.addr %s266, 8
        %s268 = scalar_lea.vmem %s0, %s267
        %s269 = smul.u32 2, %s22
      $region32: #{_lambda_.1} parent=27 // pred_fallthru
        _
      // Predicated region
      $region33: #{_lambda_.1} parent=27 // pred_check
        %p270 = pneg %p76
      $region34: #{_lambda_.1} parent=27 // pred_check_branch
        %272 = sbr.rel (%p270) target = $region36
      $region35: #{_lambda_.1} parent=27 // pred_region
        %s273 = smul.u32 2, %s22
        %p274 = scmp.lt.s32.totalorder %s21, 1
        %s275 = scalar_select %p274, %s21, 1
        %p276 = scmp.lt.s32.totalorder %s273, 1
        %s277 = scalar_select %p276, %s273, 1
        %s278 = smul.addr %s275, 32
        %s279 = sadd.s32 %s277, %s278
        %s280 = smul.addr %s279, 4
        %s281 = scalar_lea.vmem %s1, %s280
        %s282 = smul.u32 2, %s22
      $region36: #{_lambda_.1} parent=27 // pred_fallthru
        _
    $region28: #{_lambda_.1} parent=5 // pred_fallthru
      _
    %p283 = scmp.le.s32.totalorder 1, %s14
    %p284 = scmp.lt.s32.totalorder %s14, 3
    %p285 = pnand %p283, %p284
    %p286 = pneg %p285
    // Predicated region
    $region37: #{_lambda_.1} parent=5 // pred_check
      _
    $region38: #{_lambda_.1} parent=5 // pred_check_branch
      %288 = sbr.rel (%p285) target = $region40
    $region39: #{_lambda_.1} parent=5 // pred_region
      %s289 = ssub.s32 %s14, 1
      %s290 = smul.u32 2, %s24
      %p291 = scmp.lt.s32.totalorder %s23, 1
      %s292 = scalar_select %p291, %s23, 1
      %p293 = scmp.lt.s32.totalorder %s290, 1
      %s294 = scalar_select %p293, %s290, 1
      %s295 = smul.addr %s292, 8
      %s296 = sadd.s32 %s294, %s295
      %s297 = smul.addr %s296, 8
      %s298 = scalar_lea.vmem %s0, %s297
      %p299 = pneg %p54
      %p300 = pneg %p51
      %s301 = smul.u32 2, %s24
      %p302 = scmp.lt.s32.totalorder %s23, 1
      %s303 = scalar_select %p302, %s23, 1
      %p304 = scmp.lt.s32.totalorder %s301, 1
      %s305 = scalar_select %p304, %s301, 1
      %s306 = smul.addr %s303, 32
      %s307 = sadd.s32 %s305, %s306
      %s308 = smul.addr %s307, 4
      %s309 = scalar_lea.vmem %s1, %s308
      %p310 = pneg %p82
      %p311 = pneg %p79
      %p312 = pneg %p103
      %p313 = pneg %p100
      %p314 = pneg %p124
      %p315 = pneg %p121
      %p316 = pneg %p145
      %p317 = pneg %p142
      %p318 = pneg %p173
      %p319 = pneg %p170
      %s320 = smul.u32 2, %s24
      %p321 = scmp.lt.s32.totalorder %s23, 1
      %s322 = scalar_select %p321, %s23, 1
      %p323 = scmp.lt.s32.totalorder %s320, 1
      %s324 = scalar_select %p323, %s320, 1
      %s325 = smul.addr %s322, 8
      %s326 = sadd.s32 %s324, %s325
      %s327 = smul.addr %s326, 8
      %s328 = scalar_lea.vmem %s5, %s327
      %p329 = pneg %p201
      %p330 = pneg %p198
      %s331 = smul.u32 2, %s24
      %p332 = scmp.lt.s32.totalorder %s23, 1
      %s333 = scalar_select %p332, %s23, 1
      %p334 = scmp.lt.s32.totalorder %s331, 1
      %s335 = scalar_select %p334, %s331, 1
      %s336 = smul.addr %s333, 2
      %s337 = sadd.s32 %s335, %s336
      %s338 = scalar_lea.vmem %s6, %s337
      %p339 = pneg %p229
      %p340 = pneg %p226
      %s341 = smul.u32 2, %s24
      %p342 = scmp.lt.s32.totalorder %s23, 1
      %s343 = scalar_select %p342, %s23, 1
      %p344 = scmp.lt.s32.totalorder %s341, 1
      %s345 = scalar_select %p344, %s341, 1
      %s346 = smul.addr %s343, 2
      %s347 = sadd.s32 %s345, %s346
      %s348 = scalar_lea.vmem %s7, %s347
      %s349 = smul.u32 2, %s24
      %p350 = scmp.lt.s32.totalorder %s23, 1
      %s351 = scalar_select %p350, %s23, 1
      %p352 = scmp.lt.s32.totalorder %s349, 1
      %s353 = scalar_select %p352, %s349, 1
      %s354 = smul.addr %s351, 8
      %s355 = sadd.s32 %s353, %s354
      %s356 = smul.addr %s355, 8
      %s357 = scalar_lea.vmem %s0, %s356
      %s358 = smul.u32 2, %s24
      %s359 = smul.u32 2, %s24
      %p360 = scmp.lt.s32.totalorder %s23, 1
      %s361 = scalar_select %p360, %s23, 1
      %p362 = scmp.lt.s32.totalorder %s359, 1
      %s363 = scalar_select %p362, %s359, 1
      %s364 = smul.addr %s361, 32
      %s365 = sadd.s32 %s363, %s364
      %s366 = smul.addr %s365, 4
      %s367 = scalar_lea.vmem %s1, %s366
      %s368 = smul.u32 2, %s24
      %s369 = smul.u32 2, %s24
      %p370 = scmp.lt.s32.totalorder %s23, 1
      %s371 = scalar_select %p370, %s23, 1
      %p372 = scmp.lt.s32.totalorder %s369, 1
      %s373 = scalar_select %p372, %s369, 1
      %s374 = smul.addr %s371, 8
      %s375 = sadd.s32 %s373, %s374
      %s376 = smul.addr %s375, 8
      %s377 = scalar_lea.vmem %s5, %s376
      %s378 = smul.u32 2, %s24
      %s379 = smul.u32 2, %s24
      %p380 = scmp.lt.s32.totalorder %s23, 1
      %s381 = scalar_select %p380, %s23, 1
      %p382 = scmp.lt.s32.totalorder %s379, 1
      %s383 = scalar_select %p382, %s379, 1
      %s384 = smul.addr %s381, 2
      %s385 = sadd.s32 %s383, %s384
      %s386 = scalar_lea.vmem %s6, %s385
      %s387 = smul.u32 2, %s24
      %s388 = smul.u32 2, %s24
      %p389 = scmp.lt.s32.totalorder %s23, 1
      %s390 = scalar_select %p389, %s23, 1
      %p391 = scmp.lt.s32.totalorder %s388, 1
      %s392 = scalar_select %p391, %s388, 1
      %s393 = smul.addr %s390, 2
      %s394 = sadd.s32 %s392, %s393
      %s395 = scalar_lea.vmem %s7, %s394
      %s396 = smul.u32 2, %s24
      %v397 = vld [vmem:[%s357] sm:$0xff]
      %v398 = vld [vmem:[%s357 + $0x8] sm:$0xff]
      %v399 = vld [vmem:[%s357 + $0x10] sm:$0xff]
      %v400 = vld [vmem:[%s357 + $0x18] sm:$0xff]
      %v401 = vld [vmem:[%s357 + $0x20] sm:$0xff]
      %v402 = vld [vmem:[%s357 + $0x28] sm:$0xff]
      %v403 = vld [vmem:[%s357 + $0x30] sm:$0xff]
      %v404 = vld [vmem:[%s357 + $0x38] sm:$0xff]
      %v405 = vld [vmem:[%s2] sm:$0xff]
      %v406 = vld [vmem:[%s2 + $0x8] sm:$0xff]
      %v407 = vld [vmem:[%s2 + $0x10] sm:$0xff]
      %v408 = vld [vmem:[%s2 + $0x18] sm:$0xff]
      %v409 = vld [vmem:[%s2 + $0x20] sm:$0xff]
      %v410 = vld [vmem:[%s2 + $0x28] sm:$0xff]
      %v411 = vld [vmem:[%s2 + $0x30] sm:$0xff]
      %v412 = vld [vmem:[%s2 + $0x38] sm:$0xff]
      %v413 = vld [vmem:[%s2 + $0x40] sm:$0xff]
      %v414 = vld [vmem:[%s2 + $0x48] sm:$0xff]
      %v415 = vld [vmem:[%s2 + $0x50] sm:$0xff]
      %v416 = vld [vmem:[%s2 + $0x58] sm:$0xff]
      %v417 = vld [vmem:[%s2 + $0x60] sm:$0xff]
      %v418 = vld [vmem:[%s2 + $0x68] sm:$0xff]
      %v419 = vld [vmem:[%s2 + $0x70] sm:$0xff]
      %v420 = vld [vmem:[%s2 + $0x78] sm:$0xff]
      %v421 = vld [vmem:[%s3] sm:$0xff]
      %v422 = vld [vmem:[%s3 + $0x8] sm:$0xff]
      %v423 = vld [vmem:[%s3 + $0x10] sm:$0xff]
      %v424 = vld [vmem:[%s3 + $0x18] sm:$0xff]
      %v425 = vld [vmem:[%s3 + $0x20] sm:$0xff]
      %v426 = vld [vmem:[%s3 + $0x28] sm:$0xff]
      %v427 = vld [vmem:[%s3 + $0x30] sm:$0xff]
      %v428 = vld [vmem:[%s3 + $0x38] sm:$0xff]
      %v429 = vld [vmem:[%s3 + $0x40] sm:$0xff]
      %v430 = vld [vmem:[%s3 + $0x48] sm:$0xff]
      %v431 = vld [vmem:[%s3 + $0x50] sm:$0xff]
      %v432 = vld [vmem:[%s3 + $0x58] sm:$0xff]
      %v433 = vld [vmem:[%s3 + $0x60] sm:$0xff]
      %v434 = vld [vmem:[%s3 + $0x68] sm:$0xff]
      %v435 = vld [vmem:[%s3 + $0x70] sm:$0xff]
      %v436 = vld [vmem:[%s3 + $0x78] sm:$0xff]
      %438 = vset.pattern.permute.xlu0 0
      %439 = vperm.xlu0 %438, %v421
      %v440 = vpop.permute.xlu0 %439
      %443 = vset.pattern.permute.xlu0 0
      %444 = vperm.xlu0 %443, %v422
      %v445 = vpop.permute.xlu0 %444
      %448 = vset.pattern.permute.xlu0 0
      %449 = vperm.xlu0 %448, %v423
      %v450 = vpop.permute.xlu0 %449
      %453 = vset.pattern.permute.xlu0 0
      %454 = vperm.xlu0 %453, %v424
      %v455 = vpop.permute.xlu0 %454
      %458 = vset.pattern.permute.xlu0 0
      %459 = vperm.xlu0 %458, %v425
      %v460 = vpop.permute.xlu0 %459
      %463 = vset.pattern.permute.xlu0 0
      %464 = vperm.xlu0 %463, %v426
      %v465 = vpop.permute.xlu0 %464
      %468 = vset.pattern.permute.xlu0 0
      %469 = vperm.xlu0 %468, %v427
      %v470 = vpop.permute.xlu0 %469
      %473 = vset.pattern.permute.xlu0 0
      %474 = vperm.xlu0 %473, %v428
      %v475 = vpop.permute.xlu0 %474
      %478 = vset.pattern.permute.xlu0 0
      %479 = vperm.xlu0 %478, %v429
      %v480 = vpop.permute.xlu0 %479
      %483 = vset.pattern.permute.xlu0 0
      %484 = vperm.xlu0 %483, %v430
      %v485 = vpop.permute.xlu0 %484
      %488 = vset.pattern.permute.xlu0 0
      %489 = vperm.xlu0 %488, %v431
      %v490 = vpop.permute.xlu0 %489
      %493 = vset.pattern.permute.xlu0 0
      %494 = vperm.xlu0 %493, %v432
      %v495 = vpop.permute.xlu0 %494
      %498 = vset.pattern.permute.xlu0 0
      %499 = vperm.xlu0 %498, %v433
      %v500 = vpop.permute.xlu0 %499
      %503 = vset.pattern.permute.xlu0 0
      %504 = vperm.xlu0 %503, %v434
      %v505 = vpop.permute.xlu0 %504
      %508 = vset.pattern.permute.xlu0 0
      %509 = vperm.xlu0 %508, %v435
      %v510 = vpop.permute.xlu0 %509
      %513 = vset.pattern.permute.xlu0 0
      %514 = vperm.xlu0 %513, %v436
      %v515 = vpop.permute.xlu0 %514
      %vm517 = vcmask 261120
      %v519 = vsel %vm517, %v405, 0
      %v522 = vsel %vm517, %v406, 0
      %v525 = vsel %vm517, %v407, 0
      %v528 = vsel %vm517, %v408, 0
      %v531 = vsel %vm517, %v409, 0
      %v534 = vsel %vm517, %v410, 0
      %v537 = vsel %vm517, %v411, 0
      %v540 = vsel %vm517, %v412, 0
      %v543 = vsel %vm517, %v413, 0
      %v546 = vsel %vm517, %v414, 0
      %v549 = vsel %vm517, %v415, 0
      %v552 = vsel %vm517, %v416, 0
      %v555 = vsel %vm517, %v417, 0
      %v558 = vsel %vm517, %v418, 0
      %v561 = vsel %vm517, %v419, 0
      %v564 = vsel %vm517, %v420, 0
      %566 = vmatprep.subr.mxu0 %v398
      %567 = vmatpush1.msra.mxu0 %v397
      %568 = vmatprep.subr.mxu0 %v400
      %569 = vmatpush1.msra.mxu0 %v399
      %570 = vmatprep.subr.mxu0 %v402
      %571 = vmatpush1.msra.mxu0 %v401
      %572 = vmatprep.subr.mxu0 %v404
      %573 = vmatpush1.msra.mxu0 %v403
      %574 = vmatprep.subr.mxu0 0.0
      %575 = vmatpush1.msra.mxu0 0.0
      %576 = vmatprep.subr.mxu0 0.0
      %577 = vmatpush1.msra.mxu0 0.0
      %578 = vmatprep.subr.mxu0 0.0
      %579 = vmatpush1.msra.mxu0 0.0
      %580 = vmatprep.subr.mxu0 0.0
      %581 = vmatpush1.msra.mxu0 0.0
      %582 = vmatprep.subr.mxu0 0.0
      %583 = vmatpush1.msra.mxu0 0.0
      %584 = vmatprep.subr.mxu0 0.0
      %585 = vmatpush1.msra.mxu0 0.0
      %586 = vmatprep.subr.mxu0 0.0
      %587 = vmatpush1.msra.mxu0 0.0
      %588 = vmatprep.subr.mxu0 0.0
      %589 = vmatpush1.msra.mxu0 0.0
      %590 = vmatprep.subr.mxu0 0.0
      %591 = vmatpush1.msra.mxu0 0.0
      %592 = vmatprep.subr.mxu0 0.0
      %593 = vmatpush1.msra.mxu0 0.0
      %594 = vmatprep.subr.mxu0 0.0
      %595 = vmatpush1.msra.mxu0 0.0
      %596 = vmatprep.subr.mxu0 0.0
      %597 = vmatpush1.msra.mxu0 0.0
      %598 = vmatprep.subr.mxu0 0.0
      %599 = vmatpush1.msra.mxu0 0.0
      %600 = vmatprep.subr.mxu0 0.0
      %601 = vmatpush1.msra.mxu0 0.0
      %602 = vmatprep.subr.mxu0 0.0
      %603 = vmatpush1.msra.mxu0 0.0
      %604 = vmatprep.subr.mxu0 0.0
      %605 = vmatpush1.msra.mxu0 0.0
      %606 = vmatprep.subr.mxu0 0.0
      %607 = vmatpush1.msra.mxu0 0.0
      %608 = vmatprep.subr.mxu0 0.0
      %609 = vmatpush1.msra.mxu0 0.0
      %610 = vmatprep.subr.mxu0 0.0
      %611 = vmatpush1.msra.mxu0 0.0
      %612 = vmatprep.subr.mxu0 0.0
      %613 = vmatpush1.msra.mxu0 0.0
      %614 = vmatprep.subr.mxu0 0.0
      %615 = vmatpush1.msra.mxu0 0.0
      %616 = vmatprep.subr.mxu0 0.0
      %617 = vmatpush1.msra.mxu0 0.0
      %618 = vmatprep.subr.mxu0 0.0
      %619 = vmatpush1.msra.mxu0 0.0
      %620 = vmatprep.subr.mxu0 0.0
      %621 = vmatpush1.msra.mxu0 0.0
      %622 = vmatprep.subr.mxu0 0.0
      %623 = vmatpush1.msra.mxu0 0.0
      %624 = vmatprep.subr.mxu0 0.0
      %625 = vmatpush1.msra.mxu0 0.0
      %626 = vmatprep.subr.mxu0 0.0
      %627 = vmatpush1.msra.mxu0 0.0
      %628 = vmatprep.subr.mxu0 0.0
      %629 = vmatpush1.msra.mxu0 0.0
      %630 = vmatprep.mubr.f32.mxu0 0.0
      %631 = vmatmul.mubr.f32.gmra.mrb[0].mxu0 %v519
      %v632 = vpop.f32.mrb[0].mxu0
      %v633 = vadd.f32 %v440, %v632
      %v634 = vpop.f32.mrb[0].mxu0
      %v635 = vadd.f32 %v440, %v634
      %636 = vmatprep.mubr.f32.mxu0 0.0
      %637 = vmatmul.mubr.f32.gmra.mrb[0].mxu0 %v522
      %v638 = vpop.f32.mrb[0].mxu0
      %v639 = vadd.f32 %v445, %v638
      %v640 = vpop.f32.mrb[0].mxu0
      %v641 = vadd.f32 %v445, %v640
      %642 = vmatprep.mubr.f32.mxu0 0.0
      %643 = vmatmul.mubr.f32.gmra.mrb[0].mxu0 %v525
      %v644 = vpop.f32.mrb[0].mxu0
      %v645 = vadd.f32 %v450, %v644
      %v646 = vpop.f32.mrb[0].mxu0
      %v647 = vadd.f32 %v450, %v646
      %648 = vmatprep.mubr.f32.mxu0 0.0
      %649 = vmatmul.mubr.f32.gmra.mrb[0].mxu0 %v528
      %v650 = vpop.f32.mrb[0].mxu0
      %v651 = vadd.f32 %v455, %v650
      %v652 = vpop.f32.mrb[0].mxu0
      %v653 = vadd.f32 %v455, %v652
      %654 = vmatprep.mubr.f32.mxu0 0.0
      %655 = vmatmul.mubr.f32.gmra.mrb[0].mxu0 %v531
      %v656 = vpop.f32.mrb[0].mxu0
      %v657 = vadd.f32 %v460, %v656
      %v658 = vpop.f32.mrb[0].mxu0
      %v659 = vadd.f32 %v460, %v658
      %660 = vmatprep.mubr.f32.mxu0 0.0
      %661 = vmatmul.mubr.f32.gmra.mrb[0].mxu0 %v534
      %v662 = vpop.f32.mrb[0].mxu0
      %v663 = vadd.f32 %v465, %v662
      %v664 = vpop.f32.mrb[0].mxu0
      %v665 = vadd.f32 %v465, %v664
      %666 = vmatprep.mubr.f32.mxu0 0.0
      %667 = vmatmul.mubr.f32.gmra.mrb[0].mxu0 %v537
      %v668 = vpop.f32.mrb[0].mxu0
      %v669 = vadd.f32 %v470, %v668
      %v670 = vpop.f32.mrb[0].mxu0
      %v671 = vadd.f32 %v470, %v670
      %672 = vmatprep.mubr.f32.mxu0 0.0
      %673 = vmatmul.mubr.f32.gmra.mrb[0].mxu0 %v540
      %v674 = vpop.f32.mrb[0].mxu0
      %v675 = vadd.f32 %v475, %v674
      %v676 = vpop.f32.mrb[0].mxu0
      %v677 = vadd.f32 %v475, %v676
      %678 = vmatprep.mubr.f32.mxu0 0.0
      %679 = vmatmul.mubr.f32.gmra.mrb[0].mxu0 %v543
      %v680 = vpop.f32.mrb[0].mxu0
      %v681 = vadd.f32 %v480, %v680
      %v682 = vpop.f32.mrb[0].mxu0
      %v683 = vadd.f32 %v480, %v682
      %684 = vmatprep.mubr.f32.mxu0 0.0
      %685 = vmatmul.mubr.f32.gmra.mrb[0].mxu0 %v546
      %v686 = vpop.f32.mrb[0].mxu0
      %v687 = vadd.f32 %v485, %v686
      %v688 = vpop.f32.mrb[0].mxu0
      %v689 = vadd.f32 %v485, %v688
      %690 = vmatprep.mubr.f32.mxu0 0.0
      %691 = vmatmul.mubr.f32.gmra.mrb[0].mxu0 %v549
      %v692 = vpop.f32.mrb[0].mxu0
      %v693 = vadd.f32 %v490, %v692
      %v694 = vpop.f32.mrb[0].mxu0
      %v695 = vadd.f32 %v490, %v694
      %696 = vmatprep.mubr.f32.mxu0 0.0
      %697 = vmatmul.mubr.f32.gmra.mrb[0].mxu0 %v552
      %v698 = vpop.f32.mrb[0].mxu0
      %v699 = vadd.f32 %v495, %v698
      %v700 = vpop.f32.mrb[0].mxu0
      %v701 = vadd.f32 %v495, %v700
      %702 = vmatprep.mubr.f32.mxu0 0.0
      %703 = vmatmul.mubr.f32.gmra.mrb[0].mxu0 %v555
      %v704 = vpop.f32.mrb[0].mxu0
      %v705 = vadd.f32 %v500, %v704
      %v706 = vpop.f32.mrb[0].mxu0
      %v707 = vadd.f32 %v500, %v706
      %708 = vmatprep.mubr.f32.mxu0 0.0
      %709 = vmatmul.mubr.f32.gmra.mrb[0].mxu0 %v558
      %v710 = vpop.f32.mrb[0].mxu0
      %v711 = vadd.f32 %v505, %v710
      %v712 = vpop.f32.mrb[0].mxu0
      %v713 = vadd.f32 %v505, %v712
      %714 = vmatprep.mubr.f32.mxu0 0.0
      %715 = vmatmul.mubr.f32.gmra.mrb[0].mxu0 %v561
      %v716 = vpop.f32.mrb[0].mxu0
      %v717 = vadd.f32 %v510, %v716
      %v718 = vpop.f32.mrb[0].mxu0
      %v719 = vadd.f32 %v510, %v718
      %720 = vmatprep.mubr.f32.mxu0 0.0
      %721 = vmatmul.mubr.f32.gmra.mrb[0].mxu0 %v564
      %v722 = vpop.f32.mrb[0].mxu0
      %v723 = vadd.f32 %v515, %v722
      %v724 = vpop.f32.mrb[0].mxu0
      %v725 = vadd.f32 %v515, %v724
      %726 = vdwg.mxu0
      %v727 = vld [vmem:[%s367] sm:$0xff]
      %v728 = vld [vmem:[%s367 + $0x8] sm:$0xff]
      %v729 = vld [vmem:[%s367 + $0x10] sm:$0xff]
      %v730 = vld [vmem:[%s367 + $0x18] sm:$0xff]
      %v731 = vld [vmem:[%s367 + $0x20] sm:$0xff]
      %v732 = vld [vmem:[%s367 + $0x28] sm:$0xff]
      %v733 = vld [vmem:[%s367 + $0x30] sm:$0xff]
      %v734 = vld [vmem:[%s367 + $0x38] sm:$0xff]
      %v735 = vld [vmem:[%s367 + $0x40] sm:$0xff]
      %v736 = vld [vmem:[%s367 + $0x48] sm:$0xff]
      %v737 = vld [vmem:[%s367 + $0x50] sm:$0xff]
      %v738 = vld [vmem:[%s367 + $0x58] sm:$0xff]
      %v739 = vld [vmem:[%s367 + $0x60] sm:$0xff]
      %v740 = vld [vmem:[%s367 + $0x68] sm:$0xff]
      %v741 = vld [vmem:[%s367 + $0x70] sm:$0xff]
      %v742 = vld [vmem:[%s367 + $0x78] sm:$0xff]
      %v743 = vunpack.c.l.bf16 %v727
      %v744 = vunpack.c.h.bf16 %v727
      %v745 = vunpack.c.l.bf16 %v728
      %v746 = vunpack.c.h.bf16 %v728
      %v747 = vunpack.c.l.bf16 %v729
      %v748 = vunpack.c.h.bf16 %v729
      %v749 = vunpack.c.l.bf16 %v730
      %v750 = vunpack.c.h.bf16 %v730
      %v751 = vunpack.c.l.bf16 %v731
      %v752 = vunpack.c.h.bf16 %v731
      %v753 = vunpack.c.l.bf16 %v732
      %v754 = vunpack.c.h.bf16 %v732
      %v755 = vunpack.c.l.bf16 %v733
      %v756 = vunpack.c.h.bf16 %v733
      %v757 = vunpack.c.l.bf16 %v734
      %v758 = vunpack.c.h.bf16 %v734
      %v759 = vunpack.c.l.bf16 %v735
      %v760 = vunpack.c.h.bf16 %v735
      %v761 = vunpack.c.l.bf16 %v736
      %v762 = vunpack.c.h.bf16 %v736
      %v763 = vunpack.c.l.bf16 %v737
      %v764 = vunpack.c.h.bf16 %v737
      %v765 = vunpack.c.l.bf16 %v738
      %v766 = vunpack.c.h.bf16 %v738
      %v767 = vunpack.c.l.bf16 %v739
      %v768 = vunpack.c.h.bf16 %v739
      %v769 = vunpack.c.l.bf16 %v740
      %v770 = vunpack.c.h.bf16 %v740
      %v771 = vunpack.c.l.bf16 %v741
      %v772 = vunpack.c.h.bf16 %v741
      %v773 = vunpack.c.l.bf16 %v742
      %v774 = vunpack.c.h.bf16 %v742
      %v775 = vadd.f32 %v633, %v743
      %v776 = vadd.f32 %v635, %v744
      %v777 = vadd.f32 %v639, %v745
      %v778 = vadd.f32 %v641, %v746
      %v779 = vadd.f32 %v645, %v747
      %v780 = vadd.f32 %v647, %v748
      %v781 = vadd.f32 %v651, %v749
      %v782 = vadd.f32 %v653, %v750
      %v783 = vadd.f32 %v657, %v751
      %v784 = vadd.f32 %v659, %v752
      %v785 = vadd.f32 %v663, %v753
      %v786 = vadd.f32 %v665, %v754
      %v787 = vadd.f32 %v669, %v755
      %v788 = vadd.f32 %v671, %v756
      %v789 = vadd.f32 %v675, %v757
      %v790 = vadd.f32 %v677, %v758
      %v791 = vadd.f32 %v681, %v759
      %v792 = vadd.f32 %v683, %v760
      %v793 = vadd.f32 %v687, %v761
      %v794 = vadd.f32 %v689, %v762
      %v795 = vadd.f32 %v693, %v763
      %v796 = vadd.f32 %v695, %v764
      %v797 = vadd.f32 %v699, %v765
      %v798 = vadd.f32 %v701, %v766
      %v799 = vadd.f32 %v705, %v767
      %v800 = vadd.f32 %v707, %v768
      %v801 = vadd.f32 %v711, %v769
      %v802 = vadd.f32 %v713, %v770
      %v803 = vadd.f32 %v717, %v771
      %v804 = vadd.f32 %v719, %v772
      %v805 = vadd.f32 %v723, %v773
      %v806 = vadd.f32 %v725, %v774
      %v807 = vmax.f32 %v775, %v779
      %v808 = vmax.f32 %v777, %v781
      %v809 = vmax.f32 %v807, %v783
      %v810 = vmax.f32 %v808, %v785
      %v811 = vmax.f32 %v809, %v787
      %v812 = vmax.f32 %v810, %v789
      %v813 = vmax.f32 %v811, %v791
      %v814 = vmax.f32 %v812, %v793
      %v815 = vmax.f32 %v813, %v795
      %v816 = vmax.f32 %v814, %v797
      %v817 = vmax.f32 %v815, %v799
      %v818 = vmax.f32 %v816, %v801
      %v819 = vmax.f32 %v817, %v803
      %v820 = vmax.f32 %v818, %v805
      %v821 = vmax.f32 %v819, %v820
      %v822 = vrot.slane %v821, 4
      %v823 = vmax.f32 %v821, %v822
      %v824 = vrot.slane %v823, 2
      %v825 = vmax.f32 %v823, %v824
      %v826 = vrot.slane %v825, 1
      %v827 = vmax.f32 %v825, %v826
      %v828 = vmax.f32 %v776, %v780
      %v829 = vmax.f32 %v778, %v782
      %v830 = vmax.f32 %v828, %v784
      %v831 = vmax.f32 %v829, %v786
      %v832 = vmax.f32 %v830, %v788
      %v833 = vmax.f32 %v831, %v790
      %v834 = vmax.f32 %v832, %v792
      %v835 = vmax.f32 %v833, %v794
      %v836 = vmax.f32 %v834, %v796
      %v837 = vmax.f32 %v835, %v798
      %v838 = vmax.f32 %v836, %v800
      %v839 = vmax.f32 %v837, %v802
      %v840 = vmax.f32 %v838, %v804
      %v841 = vmax.f32 %v839, %v806
      %v842 = vmax.f32 %v840, %v841
      %v843 = vrot.slane %v842, 4
      %v844 = vmax.f32 %v842, %v843
      %v845 = vrot.slane %v844, 2
      %v846 = vmax.f32 %v844, %v845
      %v847 = vrot.slane %v846, 1
      %v848 = vmax.f32 %v846, %v847
      %v849 = vlaneseq
      %v850 = vshrl.u32 %v849, 7
      %v851 = vadd.s32 %v850, 8
      %v852 = vadd.s32 %v850, 16
      %v853 = vadd.s32 %v850, 24
      %v854 = vadd.s32 %v850, 32
      %v855 = vadd.s32 %v850, 40
      %v856 = vadd.s32 %v850, 48
      %v857 = vadd.s32 %v850, 56
      %v858 = vadd.s32 %v850, 64
      %v859 = vadd.s32 %v850, 72
      %v860 = vadd.s32 %v850, 80
      %v861 = vadd.s32 %v850, 88
      %v862 = vadd.s32 %v850, 96
      %v863 = vadd.s32 %v850, 104
      %v864 = vadd.s32 %v850, 112
      %v865 = vadd.s32 %v850, 120
      %vm866 = vcmp.eq.f32.partialorder %v775, %v827
      %vm867 = vcmp.eq.f32.partialorder %v776, %v848
      %vm868 = vcmp.eq.f32.partialorder %v777, %v827
      %vm869 = vcmp.eq.f32.partialorder %v778, %v848
      %vm870 = vcmp.eq.f32.partialorder %v779, %v827
      %vm871 = vcmp.eq.f32.partialorder %v780, %v848
      %vm872 = vcmp.eq.f32.partialorder %v781, %v827
      %vm873 = vcmp.eq.f32.partialorder %v782, %v848
      %vm874 = vcmp.eq.f32.partialorder %v783, %v827
      %vm875 = vcmp.eq.f32.partialorder %v784, %v848
      %vm876 = vcmp.eq.f32.partialorder %v785, %v827
      %vm877 = vcmp.eq.f32.partialorder %v786, %v848
      %vm878 = vcmp.eq.f32.partialorder %v787, %v827
      %vm879 = vcmp.eq.f32.partialorder %v788, %v848
      %vm880 = vcmp.eq.f32.partialorder %v789, %v827
      %vm881 = vcmp.eq.f32.partialorder %v790, %v848
      %vm882 = vcmp.eq.f32.partialorder %v791, %v827
      %vm883 = vcmp.eq.f32.partialorder %v792, %v848
      %vm884 = vcmp.eq.f32.partialorder %v793, %v827
      %vm885 = vcmp.eq.f32.partialorder %v794, %v848
      %vm886 = vcmp.eq.f32.partialorder %v795, %v827
      %vm887 = vcmp.eq.f32.partialorder %v796, %v848
      %vm888 = vcmp.eq.f32.partialorder %v797, %v827
      %vm889 = vcmp.eq.f32.partialorder %v798, %v848
      %vm890 = vcmp.eq.f32.partialorder %v799, %v827
      %vm891 = vcmp.eq.f32.partialorder %v800, %v848
      %vm892 = vcmp.eq.f32.partialorder %v801, %v827
      %vm893 = vcmp.eq.f32.partialorder %v802, %v848
      %vm894 = vcmp.eq.f32.partialorder %v803, %v827
      %vm895 = vcmp.eq.f32.partialorder %v804, %v848
      %vm896 = vcmp.eq.f32.partialorder %v805, %v827
      %vm897 = vcmp.eq.f32.partialorder %v806, %v848
      %v898 = vcvt.s32.f32 %v850
      %v899 = vcvt.s32.f32 %v851
      %v900 = vcvt.s32.f32 %v852
      %v901 = vcvt.s32.f32 %v853
      %v902 = vcvt.s32.f32 %v854
      %v903 = vcvt.s32.f32 %v855
      %v904 = vcvt.s32.f32 %v856
      %v905 = vcvt.s32.f32 %v857
      %v906 = vcvt.s32.f32 %v858
      %v907 = vcvt.s32.f32 %v859
      %v908 = vcvt.s32.f32 %v860
      %v909 = vcvt.s32.f32 %v861
      %v910 = vcvt.s32.f32 %v862
      %v911 = vcvt.s32.f32 %v863
      %v912 = vcvt.s32.f32 %v864
      %v913 = vcvt.s32.f32 %v865
      %v914 = vsel %vm866, %v898, 128.0
      %v915 = vsel %vm867, %v898, 128.0
      %v916 = vsel %vm868, %v899, 128.0
      %v917 = vsel %vm869, %v899, 128.0
      %v918 = vsel %vm870, %v900, 128.0
      %v919 = vsel %vm871, %v900, 128.0
      %v920 = vsel %vm872, %v901, 128.0
      %v921 = vsel %vm873, %v901, 128.0
      %v922 = vsel %vm874, %v902, 128.0
      %v923 = vsel %vm875, %v902, 128.0
      %v924 = vsel %vm876, %v903, 128.0
      %v925 = vsel %vm877, %v903, 128.0
      %v926 = vsel %vm878, %v904, 128.0
      %v927 = vsel %vm879, %v904, 128.0
      %v928 = vsel %vm880, %v905, 128.0
      %v929 = vsel %vm881, %v905, 128.0
      %v930 = vsel %vm882, %v906, 128.0
      %v931 = vsel %vm883, %v906, 128.0
      %v932 = vsel %vm884, %v907, 128.0
      %v933 = vsel %vm885, %v907, 128.0
      %v934 = vsel %vm886, %v908, 128.0
      %v935 = vsel %vm887, %v908, 128.0
      %v936 = vsel %vm888, %v909, 128.0
      %v937 = vsel %vm889, %v909, 128.0
      %v938 = vsel %vm890, %v910, 128.0
      %v939 = vsel %vm891, %v910, 128.0
      %v940 = vsel %vm892, %v911, 128.0
      %v941 = vsel %vm893, %v911, 128.0
      %v942 = vsel %vm894, %v912, 128.0
      %v943 = vsel %vm895, %v912, 128.0
      %v944 = vsel %vm896, %v913, 128.0
      %v945 = vsel %vm897, %v913, 128.0
      %v946 = vmin.f32 %v914, %v918
      %v947 = vmin.f32 %v916, %v920
      %v948 = vmin.f32 %v946, %v922
      %v949 = vmin.f32 %v947, %v924
      %v950 = vmin.f32 %v948, %v926
      %v951 = vmin.f32 %v949, %v928
      %v952 = vmin.f32 %v950, %v930
      %v953 = vmin.f32 %v951, %v932
      %v954 = vmin.f32 %v952, %v934
      %v955 = vmin.f32 %v953, %v936
      %v956 = vmin.f32 %v954, %v938
      %v957 = vmin.f32 %v955, %v940
      %v958 = vmin.f32 %v956, %v942
      %v959 = vmin.f32 %v957, %v944
      %v960 = vmin.f32 %v958, %v959
      %v961 = vrot.slane %v960, 4
      %v962 = vmin.f32 %v960, %v961
      %v963 = vrot.slane %v962, 2
      %v964 = vmin.f32 %v962, %v963
      %v965 = vrot.slane %v964, 1
      %v966 = vmin.f32 %v964, %v965
      %v967 = vmin.f32 %v915, %v919
      %v968 = vmin.f32 %v917, %v921
      %v969 = vmin.f32 %v967, %v923
      %v970 = vmin.f32 %v968, %v925
      %v971 = vmin.f32 %v969, %v927
      %v972 = vmin.f32 %v970, %v929
      %v973 = vmin.f32 %v971, %v931
      %v974 = vmin.f32 %v972, %v933
      %v975 = vmin.f32 %v973, %v935
      %v976 = vmin.f32 %v974, %v937
      %v977 = vmin.f32 %v975, %v939
      %v978 = vmin.f32 %v976, %v941
      %v979 = vmin.f32 %v977, %v943
      %v980 = vmin.f32 %v978, %v945
      %v981 = vmin.f32 %v979, %v980
      %v982 = vrot.slane %v981, 4
      %v983 = vmin.f32 %v981, %v982
      %v984 = vrot.slane %v983, 2
      %v985 = vmin.f32 %v983, %v984
      %v986 = vrot.slane %v985, 1
      %v987 = vmin.f32 %v985, %v986
      %v988 = vcvt.f32.s32.to.zero.pseudo %v966
      %v989 = vcvt.f32.s32.to.zero.pseudo %v987
      %vm990 = vcmp.eq.s32.totalorder %v850, %v988
      %vm991 = vcmp.eq.s32.totalorder %v850, %v989
      %vm992 = vcmp.eq.s32.totalorder %v851, %v988
      %vm993 = vcmp.eq.s32.totalorder %v851, %v989
      %vm994 = vcmp.eq.s32.totalorder %v852, %v988
      %vm995 = vcmp.eq.s32.totalorder %v852, %v989
      %vm996 = vcmp.eq.s32.totalorder %v853, %v988
      %vm997 = vcmp.eq.s32.totalorder %v853, %v989
      %vm998 = vcmp.eq.s32.totalorder %v854, %v988
      %vm999 = vcmp.eq.s32.totalorder %v854, %v989
      %vm1000 = vcmp.eq.s32.totalorder %v855, %v988
      %vm1001 = vcmp.eq.s32.totalorder %v855, %v989
      %vm1002 = vcmp.eq.s32.totalorder %v856, %v988
      %vm1003 = vcmp.eq.s32.totalorder %v856, %v989
      %vm1004 = vcmp.eq.s32.totalorder %v857, %v988
      %vm1005 = vcmp.eq.s32.totalorder %v857, %v989
      %vm1006 = vcmp.eq.s32.totalorder %v858, %v988
      %vm1007 = vcmp.eq.s32.totalorder %v858, %v989
      %vm1008 = vcmp.eq.s32.totalorder %v859, %v988
      %vm1009 = vcmp.eq.s32.totalorder %v859, %v989
      %vm1010 = vcmp.eq.s32.totalorder %v860, %v988
      %vm1011 = vcmp.eq.s32.totalorder %v860, %v989
      %vm1012 = vcmp.eq.s32.totalorder %v861, %v988
      %vm1013 = vcmp.eq.s32.totalorder %v861, %v989
      %vm1014 = vcmp.eq.s32.totalorder %v862, %v988
      %vm1015 = vcmp.eq.s32.totalorder %v862, %v989
      %vm1016 = vcmp.eq.s32.totalorder %v863, %v988
      %vm1017 = vcmp.eq.s32.totalorder %v863, %v989
      %vm1018 = vcmp.eq.s32.totalorder %v864, %v988
      %vm1019 = vcmp.eq.s32.totalorder %v864, %v989
      %vm1020 = vcmp.eq.s32.totalorder %v865, %v988
      %vm1021 = vcmp.eq.s32.totalorder %v865, %v989
      %v1022 = vsel %vm990, 1, 0
      %v1023 = vsel %vm991, 1, 0
      %v1024 = vsel %vm992, 1, 0
      %v1025 = vsel %vm993, 1, 0
      %v1026 = vsel %vm994, 1, 0
      %v1027 = vsel %vm995, 1, 0
      %v1028 = vsel %vm996, 1, 0
      %v1029 = vsel %vm997, 1, 0
      %v1030 = vsel %vm998, 1, 0
      %v1031 = vsel %vm999, 1, 0
      %v1032 = vsel %vm1000, 1, 0
      %v1033 = vsel %vm1001, 1, 0
      %v1034 = vsel %vm1002, 1, 0
      %v1035 = vsel %vm1003, 1, 0
      %v1036 = vsel %vm1004, 1, 0
      %v1037 = vsel %vm1005, 1, 0
      %v1038 = vsel %vm1006, 1, 0
      %v1039 = vsel %vm1007, 1, 0
      %v1040 = vsel %vm1008, 1, 0
      %v1041 = vsel %vm1009, 1, 0
      %v1042 = vsel %vm1010, 1, 0
      %v1043 = vsel %vm1011, 1, 0
      %v1044 = vsel %vm1012, 1, 0
      %v1045 = vsel %vm1013, 1, 0
      %v1046 = vsel %vm1014, 1, 0
      %v1047 = vsel %vm1015, 1, 0
      %v1048 = vsel %vm1016, 1, 0
      %v1049 = vsel %vm1017, 1, 0
      %v1050 = vsel %vm1018, 1, 0
      %v1051 = vsel %vm1019, 1, 0
      %v1052 = vsel %vm1020, 1, 0
      %v1053 = vsel %vm1021, 1, 0
      %v1054 = vcvt.s32.f32 %v1022
      %v1055 = vcvt.s32.f32 %v1023
      %v1056 = vcvt.s32.f32 %v1024
      %v1057 = vcvt.s32.f32 %v1025
      %v1058 = vcvt.s32.f32 %v1026
      %v1059 = vcvt.s32.f32 %v1027
      %v1060 = vcvt.s32.f32 %v1028
      %v1061 = vcvt.s32.f32 %v1029
      %v1062 = vcvt.s32.f32 %v1030
      %v1063 = vcvt.s32.f32 %v1031
      %v1064 = vcvt.s32.f32 %v1032
      %v1065 = vcvt.s32.f32 %v1033
      %v1066 = vcvt.s32.f32 %v1034
      %v1067 = vcvt.s32.f32 %v1035
      %v1068 = vcvt.s32.f32 %v1036
      %v1069 = vcvt.s32.f32 %v1037
      %v1070 = vcvt.s32.f32 %v1038
      %v1071 = vcvt.s32.f32 %v1039
      %v1072 = vcvt.s32.f32 %v1040
      %v1073 = vcvt.s32.f32 %v1041
      %v1074 = vcvt.s32.f32 %v1042
      %v1075 = vcvt.s32.f32 %v1043
      %v1076 = vcvt.s32.f32 %v1044
      %v1077 = vcvt.s32.f32 %v1045
      %v1078 = vcvt.s32.f32 %v1046
      %v1079 = vcvt.s32.f32 %v1047
      %v1080 = vcvt.s32.f32 %v1048
      %v1081 = vcvt.s32.f32 %v1049
      %v1082 = vcvt.s32.f32 %v1050
      %v1083 = vcvt.s32.f32 %v1051
      %v1084 = vcvt.s32.f32 %v1052
      %v1085 = vcvt.s32.f32 %v1053
      %v1086 = vld [vmem:[%s4] sm:$0xff]
      %v1087 = vld [vmem:[%s4 + $0x8] sm:$0xff]
      %v1088 = vld [vmem:[%s4 + $0x10] sm:$0xff]
      %v1089 = vld [vmem:[%s4 + $0x18] sm:$0xff]
      %1090 = vmatprep.subr.mxu0 %v1055
      %1091 = vmatpush1.msra.mxu0 %v1054
      %1092 = vmatprep.subr.mxu0 %v1057
      %1093 = vmatpush1.msra.mxu0 %v1056
      %1094 = vmatprep.subr.mxu0 %v1059
      %1095 = vmatpush1.msra.mxu0 %v1058
      %1096 = vmatprep.subr.mxu0 %v1061
      %1097 = vmatpush1.msra.mxu0 %v1060
      %1098 = vmatprep.subr.mxu0 %v1063
      %1099 = vmatpush1.msra.mxu0 %v1062
      %1100 = vmatprep.subr.mxu0 %v1065
      %1101 = vmatpush1.msra.mxu0 %v1064
      %1102 = vmatprep.subr.mxu0 %v1067
      %1103 = vmatpush1.msra.mxu0 %v1066
      %1104 = vmatprep.subr.mxu0 %v1069
      %1105 = vmatpush1.msra.mxu0 %v1068
      %1106 = vmatprep.subr.mxu0 %v1071
      %1107 = vmatpush1.msra.mxu0 %v1070
      %1108 = vmatprep.subr.mxu0 %v1073
      %1109 = vmatpush1.msra.mxu0 %v1072
      %1110 = vmatprep.subr.mxu0 %v1075
      %1111 = vmatpush1.msra.mxu0 %v1074
      %1112 = vmatprep.subr.mxu0 %v1077
      %1113 = vmatpush1.msra.mxu0 %v1076
      %1114 = vmatprep.subr.mxu0 %v1079
      %1115 = vmatpush1.msra.mxu0 %v1078
      %1116 = vmatprep.subr.mxu0 %v1081
      %1117 = vmatpush1.msra.mxu0 %v1080
      %1118 = vmatprep.subr.mxu0 %v1083
      %1119 = vmatpush1.msra.mxu0 %v1082
      %1120 = vmatprep.subr.mxu0 %v1085
      %1121 = vmatpush1.msra.mxu0 %v1084
      %1122 = vmatprep.subr.mxu0 0.0
      %1123 = vmatpush1.msra.mxu0 0.0
      %1124 = vmatprep.subr.mxu0 0.0
      %1125 = vmatpush1.msra.mxu0 0.0
      %1126 = vmatprep.subr.mxu0 0.0
      %1127 = vmatpush1.msra.mxu0 0.0
      %1128 = vmatprep.subr.mxu0 0.0
      %1129 = vmatpush1.msra.mxu0 0.0
      %1130 = vmatprep.subr.mxu0 0.0
      %1131 = vmatpush1.msra.mxu0 0.0
      %1132 = vmatprep.subr.mxu0 0.0
      %1133 = vmatpush1.msra.mxu0 0.0
      %1134 = vmatprep.subr.mxu0 0.0
      %1135 = vmatpush1.msra.mxu0 0.0
      %1136 = vmatprep.subr.mxu0 0.0
      %1137 = vmatpush1.msra.mxu0 0.0
      %1138 = vmatprep.subr.mxu0 0.0
      %1139 = vmatpush1.msra.mxu0 0.0
      %1140 = vmatprep.subr.mxu0 0.0
      %1141 = vmatpush1.msra.mxu0 0.0
      %1142 = vmatprep.subr.mxu0 0.0
      %1143 = vmatpush1.msra.mxu0 0.0
      %1144 = vmatprep.subr.mxu0 0.0
      %1145 = vmatpush1.msra.mxu0 0.0
      %1146 = vmatprep.subr.mxu0 0.0
      %1147 = vmatpush1.msra.mxu0 0.0
      %1148 = vmatprep.subr.mxu0 0.0
      %1149 = vmatpush1.msra.mxu0 0.0
      %1150 = vmatprep.subr.mxu0 0.0
      %1151 = vmatpush1.msra.mxu0 0.0
      %1152 = vmatprep.subr.mxu0 0.0
      %1153 = vmatpush1.msra.mxu0 0.0
      %1154 = vmatprep.mubr.f32.mxu0 0.0
      %1155 = vmatmul.mubr.f32.gmra.mrb[0].mxu0 %v1086
      %v1156 = vpop.f32.mrb[0].mxu0
      %v1157 = vadd.f32 0.0, %v1156
      %v1158 = vpop.f32.mrb[0].mxu0
      %v1159 = vadd.f32 0.0, %v1158
      %1160 = vmatprep.mubr.f32.mxu0 0.0
      %1161 = vmatmul.mubr.f32.gmra.mrb[0].mxu0 %v1087
      %v1162 = vpop.f32.mrb[0].mxu0
      %v1163 = vadd.f32 0.0, %v1162
      %v1164 = vpop.f32.mrb[0].mxu0
      %v1165 = vadd.f32 0.0, %v1164
      %1166 = vmatprep.mubr.f32.mxu0 0.0
      %1167 = vmatmul.mubr.f32.gmra.mrb[0].mxu0 %v1088
      %v1168 = vpop.f32.mrb[0].mxu0
      %v1169 = vadd.f32 0.0, %v1168
      %v1170 = vpop.f32.mrb[0].mxu0
      %v1171 = vadd.f32 0.0, %v1170
      %1172 = vmatprep.mubr.f32.mxu0 0.0
      %1173 = vmatmul.mubr.f32.gmra.mrb[0].mxu0 %v1089
      %v1174 = vpop.f32.mrb[0].mxu0
      %v1175 = vadd.f32 0.0, %v1174
      %v1176 = vpop.f32.mrb[0].mxu0
      %v1177 = vadd.f32 0.0, %v1176
      %1178 = vdwg.mxu0
      %1179 = vst [vmem:[%s377] sm:$0xff] %v1157
      %1180 = vst [vmem:[%s377 + $0x8] sm:$0xff] %v1159
      %1181 = vst [vmem:[%s377 + $0x10] sm:$0xff] %v1163
      %1182 = vst [vmem:[%s377 + $0x18] sm:$0xff] %v1165
      %1183 = vst [vmem:[%s377 + $0x20] sm:$0xff] %v1169
      %1184 = vst [vmem:[%s377 + $0x28] sm:$0xff] %v1171
      %1185 = vst [vmem:[%s377 + $0x30] sm:$0xff] %v1175
      %1186 = vst [vmem:[%s377 + $0x38] sm:$0xff] %v1177
      %v1187 = vcombine.low %v988, %v989
      %v1189 = vunpack.c.l.s4 1966171168
      %v1190 = vunpack.c.0.s8 %v1189
      %v1191 = vlaneseq
      %v1192 = vshrl.u32 %v1191, 7
      %v1193 = vsub.s32 %v1190, %v1192
      %v1194 = vrot.slane %v1187, %v1193
      %v1196 = vunpack.c.l.s4 1966171168
      %v1197 = vunpack.c.0.s8 %v1196
      %v1198 = vlaneseq
      %v1199 = vshrl.u32 %v1198, 7
      %v1200 = vsub.s32 %v1197, %v1199
      %v1201 = vrot.slane %v1194, %v1200
      %v1202 = vlaneseq
      %vm1203 = vcmp.ge.s32.totalorder %v1202, 0
      %vm1204 = vcmp.lt.s32.totalorder %v1202, 256
      %vm1205 = vmand %vm1203, %vm1204
      %1206 = vst.msk [vmem:[%s386] sm:$0x3] %vm1205, %v1201
      %v1207 = vmax.f32 %v633, %v645
      %v1208 = vmax.f32 %v639, %v651
      %v1209 = vmax.f32 %v1207, %v657
      %v1210 = vmax.f32 %v1208, %v663
      %v1211 = vmax.f32 %v1209, %v669
      %v1212 = vmax.f32 %v1210, %v675
      %v1213 = vmax.f32 %v1211, %v681
      %v1214 = vmax.f32 %v1212, %v687
      %v1215 = vmax.f32 %v1213, %v693
      %v1216 = vmax.f32 %v1214, %v699
      %v1217 = vmax.f32 %v1215, %v705
      %v1218 = vmax.f32 %v1216, %v711
      %v1219 = vmax.f32 %v1217, %v717
      %v1220 = vmax.f32 %v1218, %v723
      %v1221 = vmax.f32 %v1219, %v1220
      %v1222 = vrot.slane %v1221, 4
      %v1223 = vmax.f32 %v1221, %v1222
      %v1224 = vrot.slane %v1223, 2
      %v1225 = vmax.f32 %v1223, %v1224
      %v1226 = vrot.slane %v1225, 1
      %v1227 = vmax.f32 %v1225, %v1226
      %v1228 = vmax.f32 %v635, %v647
      %v1229 = vmax.f32 %v641, %v653
      %v1230 = vmax.f32 %v1228, %v659
      %v1231 = vmax.f32 %v1229, %v665
      %v1232 = vmax.f32 %v1230, %v671
      %v1233 = vmax.f32 %v1231, %v677
      %v1234 = vmax.f32 %v1232, %v683
      %v1235 = vmax.f32 %v1233, %v689
      %v1236 = vmax.f32 %v1234, %v695
      %v1237 = vmax.f32 %v1235, %v701
      %v1238 = vmax.f32 %v1236, %v707
      %v1239 = vmax.f32 %v1237, %v713
      %v1240 = vmax.f32 %v1238, %v719
      %v1241 = vmax.f32 %v1239, %v725
      %v1242 = vmax.f32 %v1240, %v1241
      %v1243 = vrot.slane %v1242, 4
      %v1244 = vmax.f32 %v1242, %v1243
      %v1245 = vrot.slane %v1244, 2
      %v1246 = vmax.f32 %v1244, %v1245
      %v1247 = vrot.slane %v1246, 1
      %v1248 = vmax.f32 %v1246, %v1247
      %v1249 = vsub.f32 %v633, %v1227
      %v1250 = vsub.f32 %v635, %v1248
      %v1251 = vsub.f32 %v639, %v1227
      %v1252 = vsub.f32 %v641, %v1248
      %v1253 = vsub.f32 %v645, %v1227
      %v1254 = vsub.f32 %v647, %v1248
      %v1255 = vsub.f32 %v651, %v1227
      %v1256 = vsub.f32 %v653, %v1248
      %v1257 = vsub.f32 %v657, %v1227
      %v1258 = vsub.f32 %v659, %v1248
      %v1259 = vsub.f32 %v663, %v1227
      %v1260 = vsub.f32 %v665, %v1248
      %v1261 = vsub.f32 %v669, %v1227
      %v1262 = vsub.f32 %v671, %v1248
      %v1263 = vsub.f32 %v675, %v1227
      %v1264 = vsub.f32 %v677, %v1248
      %v1265 = vsub.f32 %v681, %v1227
      %v1266 = vsub.f32 %v683, %v1248
      %v1267 = vsub.f32 %v687, %v1227
      %v1268 = vsub.f32 %v689, %v1248
      %v1269 = vsub.f32 %v693, %v1227
      %v1270 = vsub.f32 %v695, %v1248
      %v1271 = vsub.f32 %v699, %v1227
      %v1272 = vsub.f32 %v701, %v1248
      %v1273 = vsub.f32 %v705, %v1227
      %v1274 = vsub.f32 %v707, %v1248
      %v1275 = vsub.f32 %v711, %v1227
      %v1276 = vsub.f32 %v713, %v1248
      %v1277 = vsub.f32 %v717, %v1227
      %v1278 = vsub.f32 %v719, %v1248
      %v1279 = vsub.f32 %v723, %v1227
      %v1280 = vsub.f32 %v725, %v1248
      %v1281 = vmul.f32 %v1249, 1.442695
      %v1282 = vpow.pop %v1281
      %v1283 = vmul.f32 %v1250, 1.442695
      %v1284 = vpow.pop %v1283
      %v1285 = vmul.f32 %v1251, 1.442695
      %v1286 = vpow.pop %v1285
      %v1287 = vmul.f32 %v1252, 1.442695
      %v1288 = vpow.pop %v1287
      %v1289 = vmul.f32 %v1253, 1.442695
      %v1290 = vpow.pop %v1289
      %v1291 = vmul.f32 %v1254, 1.442695
      %v1292 = vpow.pop %v1291
      %v1293 = vmul.f32 %v1255, 1.442695
      %v1294 = vpow.pop %v1293
      %v1295 = vmul.f32 %v1256, 1.442695
      %v1296 = vpow.pop %v1295
      %v1297 = vmul.f32 %v1257, 1.442695
      %v1298 = vpow.pop %v1297
      %v1299 = vmul.f32 %v1258, 1.442695
      %v1300 = vpow.pop %v1299
      %v1301 = vmul.f32 %v1259, 1.442695
      %v1302 = vpow.pop %v1301
      %v1303 = vmul.f32 %v1260, 1.442695
      %v1304 = vpow.pop %v1303
      %v1305 = vmul.f32 %v1261, 1.442695
      %v1306 = vpow.pop %v1305
      %v1307 = vmul.f32 %v1262, 1.442695
      %v1308 = vpow.pop %v1307
      %v1309 = vmul.f32 %v1263, 1.442695
      %v1310 = vpow.pop %v1309
      %v1311 = vmul.f32 %v1264, 1.442695
      %v1312 = vpow.pop %v1311
      %v1313 = vmul.f32 %v1265, 1.442695
      %v1314 = vpow.pop %v1313
      %v1315 = vmul.f32 %v1266, 1.442695
      %v1316 = vpow.pop %v1315
      %v1317 = vmul.f32 %v1267, 1.442695
      %v1318 = vpow.pop %v1317
      %v1319 = vmul.f32 %v1268, 1.442695
      %v1320 = vpow.pop %v1319
      %v1321 = vmul.f32 %v1269, 1.442695
      %v1322 = vpow.pop %v1321
      %v1323 = vmul.f32 %v1270, 1.442695
      %v1324 = vpow.pop %v1323
      %v1325 = vmul.f32 %v1271, 1.442695
      %v1326 = vpow.pop %v1325
      %v1327 = vmul.f32 %v1272, 1.442695
      %v1328 = vpow.pop %v1327
      %v1329 = vmul.f32 %v1273, 1.442695
      %v1330 = vpow.pop %v1329
      %v1331 = vmul.f32 %v1274, 1.442695
      %v1332 = vpow.pop %v1331
      %v1333 = vmul.f32 %v1275, 1.442695
      %v1334 = vpow.pop %v1333
      %v1335 = vmul.f32 %v1276, 1.442695
      %v1336 = vpow.pop %v1335
      %v1337 = vmul.f32 %v1277, 1.442695
      %v1338 = vpow.pop %v1337
      %v1339 = vmul.f32 %v1278, 1.442695
      %v1340 = vpow.pop %v1339
      %v1341 = vmul.f32 %v1279, 1.442695
      %v1342 = vpow.pop %v1341
      %v1343 = vmul.f32 %v1280, 1.442695
      %v1344 = vpow.pop %v1343
      %v1345 = vadd.f32 %v1282, %v1286
      %v1346 = vadd.f32 %v1345, %v1290
      %v1347 = vadd.f32 %v1346, %v1294
      %v1348 = vadd.f32 %v1347, %v1298
      %v1349 = vadd.f32 %v1348, %v1302
      %v1350 = vadd.f32 %v1349, %v1306
      %v1351 = vadd.f32 %v1350, %v1310
      %v1352 = vadd.f32 %v1351, %v1314
      %v1353 = vadd.f32 %v1352, %v1318
      %v1354 = vadd.f32 %v1353, %v1322
      %v1355 = vadd.f32 %v1354, %v1326
      %v1356 = vadd.f32 %v1355, %v1330
      %v1357 = vadd.f32 %v1356, %v1334
      %v1358 = vadd.f32 %v1357, %v1338
      %v1359 = vadd.f32 %v1358, %v1342
      %v1360 = vrot.slane %v1359, 4
      %v1361 = vadd.f32 %v1359, %v1360
      %v1362 = vrot.slane %v1361, 2
      %v1363 = vadd.f32 %v1361, %v1362
      %v1364 = vrot.slane %v1363, 1
      %v1365 = vadd.f32 %v1363, %v1364
      %v1366 = vadd.f32 %v1284, %v1288
      %v1367 = vadd.f32 %v1366, %v1292
      %v1368 = vadd.f32 %v1367, %v1296
      %v1369 = vadd.f32 %v1368, %v1300
      %v1370 = vadd.f32 %v1369, %v1304
      %v1371 = vadd.f32 %v1370, %v1308
      %v1372 = vadd.f32 %v1371, %v1312
      %v1373 = vadd.f32 %v1372, %v1316
      %v1374 = vadd.f32 %v1373, %v1320
      %v1375 = vadd.f32 %v1374, %v1324
      %v1376 = vadd.f32 %v1375, %v1328
      %v1377 = vadd.f32 %v1376, %v1332
      %v1378 = vadd.f32 %v1377, %v1336
      %v1379 = vadd.f32 %v1378, %v1340
      %v1380 = vadd.f32 %v1379, %v1344
      %v1381 = vrot.slane %v1380, 4
      %v1382 = vadd.f32 %v1380, %v1381
      %v1383 = vrot.slane %v1382, 2
      %v1384 = vadd.f32 %v1382, %v1383
      %v1385 = vrot.slane %v1384, 1
      %v1386 = vadd.f32 %v1384, %v1385
      %v1387 = vmul.f32 %v1282, %v1249
      %v1388 = vmul.f32 %v1284, %v1250
      %v1389 = vmul.f32 %v1286, %v1251
      %v1390 = vmul.f32 %v1288, %v1252
      %v1391 = vmul.f32 %v1290, %v1253
      %v1392 = vmul.f32 %v1292, %v1254
      %v1393 = vmul.f32 %v1294, %v1255
      %v1394 = vmul.f32 %v1296, %v1256
      %v1395 = vmul.f32 %v1298, %v1257
      %v1396 = vmul.f32 %v1300, %v1258
      %v1397 = vmul.f32 %v1302, %v1259
      %v1398 = vmul.f32 %v1304, %v1260
      %v1399 = vmul.f32 %v1306, %v1261
      %v1400 = vmul.f32 %v1308, %v1262
      %v1401 = vmul.f32 %v1310, %v1263
      %v1402 = vmul.f32 %v1312, %v1264
      %v1403 = vmul.f32 %v1314, %v1265
      %v1404 = vmul.f32 %v1316, %v1266
      %v1405 = vmul.f32 %v1318, %v1267
      %v1406 = vmul.f32 %v1320, %v1268
      %v1407 = vmul.f32 %v1322, %v1269
      %v1408 = vmul.f32 %v1324, %v1270
      %v1409 = vmul.f32 %v1326, %v1271
      %v1410 = vmul.f32 %v1328, %v1272
      %v1411 = vmul.f32 %v1330, %v1273
      %v1412 = vmul.f32 %v1332, %v1274
      %v1413 = vmul.f32 %v1334, %v1275
      %v1414 = vmul.f32 %v1336, %v1276
      %v1415 = vmul.f32 %v1338, %v1277
      %v1416 = vmul.f32 %v1340, %v1278
      %v1417 = vmul.f32 %v1342, %v1279
      %v1418 = vmul.f32 %v1344, %v1280
      %v1419 = vadd.f32 %v1387, %v1389
      %v1420 = vadd.f32 %v1419, %v1391
      %v1421 = vadd.f32 %v1420, %v1393
      %v1422 = vadd.f32 %v1421, %v1395
      %v1423 = vadd.f32 %v1422, %v1397
      %v1424 = vadd.f32 %v1423, %v1399
      %v1425 = vadd.f32 %v1424, %v1401
      %v1426 = vadd.f32 %v1425, %v1403
      %v1427 = vadd.f32 %v1426, %v1405
      %v1428 = vadd.f32 %v1427, %v1407
      %v1429 = vadd.f32 %v1428, %v1409
      %v1430 = vadd.f32 %v1429, %v1411
      %v1431 = vadd.f32 %v1430, %v1413
      %v1432 = vadd.f32 %v1431, %v1415
      %v1433 = vadd.f32 %v1432, %v1417
      %v1434 = vrot.slane %v1433, 4
      %v1435 = vadd.f32 %v1433, %v1434
      %v1436 = vrot.slane %v1435, 2
      %v1437 = vadd.f32 %v1435, %v1436
      %v1438 = vrot.slane %v1437, 1
      %v1439 = vadd.f32 %v1437, %v1438
      %v1440 = vadd.f32 %v1388, %v1390
      %v1441 = vadd.f32 %v1440, %v1392
      %v1442 = vadd.f32 %v1441, %v1394
      %v1443 = vadd.f32 %v1442, %v1396
      %v1444 = vadd.f32 %v1443, %v1398
      %v1445 = vadd.f32 %v1444, %v1400
      %v1446 = vadd.f32 %v1445, %v1402
      %v1447 = vadd.f32 %v1446, %v1404
      %v1448 = vadd.f32 %v1447, %v1406
      %v1449 = vadd.f32 %v1448, %v1408
      %v1450 = vadd.f32 %v1449, %v1410
      %v1451 = vadd.f32 %v1450, %v1412
      %v1452 = vadd.f32 %v1451, %v1414
      %v1453 = vadd.f32 %v1452, %v1416
      %v1454 = vadd.f32 %v1453, %v1418
      %v1455 = vrot.slane %v1454, 4
      %v1456 = vadd.f32 %v1454, %v1455
      %v1457 = vrot.slane %v1456, 2
      %v1458 = vadd.f32 %v1456, %v1457
      %v1459 = vrot.slane %v1458, 1
      %v1460 = vadd.f32 %v1458, %v1459
      %v1461 = vrcp.pop %v1365
      %v1462 = vrcp.pop %v1386
      %v1463 = vmul.f32 %v1439, %v1461
      %v1464 = vmul.f32 %v1460, %v1462
      %v1465 = vlog2.pop %v1365
      %v1466 = vmul.f32 %v1465, 0.6931472
      %v1467 = vlog2.pop %v1386
      %v1468 = vmul.f32 %v1467, 0.6931472
      %v1469 = vsub.f32 %v1463, %v1466
      %v1470 = vsub.f32 %v1464, %v1468
      %v1471 = vadd.f32 %v1469, 4.8520303
      %v1472 = vadd.f32 %v1470, 4.8520303
      %v1475 = vcombine.low %v1471, %v1472
      %v1477 = vunpack.c.l.s4 1966171168
      %v1478 = vunpack.c.0.s8 %v1477
      %v1479 = vlaneseq
      %v1480 = vshrl.u32 %v1479, 7
      %v1481 = vsub.s32 %v1478, %v1480
      %v1482 = vrot.slane %v1475, %v1481
      %v1484 = vunpack.c.l.s4 1966171168
      %v1485 = vunpack.c.0.s8 %v1484
      %v1486 = vlaneseq
      %v1487 = vshrl.u32 %v1486, 7
      %v1488 = vsub.s32 %v1485, %v1487
      %v1489 = vrot.slane %v1482, %v1488
      %1491 = vst.msk [vmem:[%s395] sm:$0x3] %vm1205, %v1489
      %s1492 = smul.u32 2, %s24
      %p1493 = scmp.lt.s32.totalorder %s23, 1
      %s1494 = scalar_select %p1493, %s23, 1
      %p1495 = scmp.lt.s32.totalorder %s1492, 1
      %s1496 = scalar_select %p1495, %s1492, 1
      %s1497 = smul.addr %s1494, 8
      %s1498 = sadd.s32 %s1496, %s1497
      %s1499 = smul.addr %s1498, 8
      %s1500 = scalar_lea.vmem %s5, %s1499
      %s1501 = smul.u32 2, %s24
      %p1502 = scmp.lt.s32.totalorder %s23, 1
      %s1503 = scalar_select %p1502, %s23, 1
      %p1504 = scmp.lt.s32.totalorder %s1501, 1
      %s1505 = scalar_select %p1504, %s1501, 1
      %s1506 = smul.addr %s1503, 2
      %s1507 = sadd.s32 %s1505, %s1506
      %s1508 = scalar_lea.vmem %s6, %s1507
      %s1509 = smul.u32 2, %s24
      %p1510 = scmp.lt.s32.totalorder %s23, 1
      %s1511 = scalar_select %p1510, %s23, 1
      %p1512 = scmp.lt.s32.totalorder %s1509, 1
      %s1513 = scalar_select %p1512, %s1509, 1
      %s1514 = smul.addr %s1511, 2
      %s1515 = sadd.s32 %s1513, %s1514
      %s1516 = scalar_lea.vmem %s7, %s1515
      // Predicated region
      $region41: #{_lambda_.1} parent=39 // pred_check
        %p1517 = pneg %p170
      $region42: #{_lambda_.1} parent=39 // pred_check_branch
        %1519 = sbr.rel (%p1517) target = $region44
      $region43: #{_lambda_.1} parent=39 // pred_region
        %s1520 = smul.u32 2, %s24
      $region44: #{_lambda_.1} parent=39 // pred_fallthru
        _
      // Predicated region
      $region45: #{_lambda_.1} parent=39 // pred_check
        %p1521 = pneg %p198
      $region46: #{_lambda_.1} parent=39 // pred_check_branch
        %1523 = sbr.rel (%p1521) target = $region48
      $region47: #{_lambda_.1} parent=39 // pred_region
        %s1524 = smul.u32 2, %s24
      $region48: #{_lambda_.1} parent=39 // pred_fallthru
        _
      // Predicated region
      $region49: #{_lambda_.1} parent=39 // pred_check
        %p1525 = pneg %p226
      $region50: #{_lambda_.1} parent=39 // pred_check_branch
        %1527 = sbr.rel (%p1525) target = $region52
      $region51: #{_lambda_.1} parent=39 // pred_region
        %s1528 = smul.u32 2, %s24
      $region52: #{_lambda_.1} parent=39 // pred_fallthru
        _
    $region40: #{_lambda_.1} parent=5 // pred_fallthru
      _
    %p1529 = scmp.le.s32.totalorder 2, %s14
    // Predicated region
    $region53: #{_lambda_.1} parent=5 // pred_check
      %p1530 = pneg %p1529
    $region54: #{_lambda_.1} parent=5 // pred_check_branch
      %1532 = sbr.rel (%p1530) target = $region56
    $region55: #{_lambda_.1} parent=5 // pred_region
      %s1533 = ssub.s32 %s14, 2
      // Predicated region
      $region57: #{_lambda_.1} parent=55 // pred_check
        %p1534 = pneg %p176
      $region58: #{_lambda_.1} parent=55 // pred_check_branch
        %1536 = sbr.rel (%p1534) target = $region60
      $region59: #{_lambda_.1} parent=55 // pred_region
        %s1537 = smul.u32 2, %s26
        %p1538 = scmp.lt.s32.totalorder %s25, 1
        %s1539 = scalar_select %p1538, %s25, 1
        %p1540 = scmp.lt.s32.totalorder %s1537, 1
        %s1541 = scalar_select %p1540, %s1537, 1
        %s1542 = smul.addr %s1539, 8
        %s1543 = sadd.s32 %s1541, %s1542
        %s1544 = smul.addr %s1543, 8
        %s1545 = scalar_lea.vmem %s5, %s1544
      $region60: #{_lambda_.1} parent=55 // pred_fallthru
        _
      // Predicated region
      $region61: #{_lambda_.1} parent=55 // pred_check
        %p1546 = pneg %p204
      $region62: #{_lambda_.1} parent=55 // pred_check_branch
        %1548 = sbr.rel (%p1546) target = $region64
      $region63: #{_lambda_.1} parent=55 // pred_region
        %s1549 = smul.u32 2, %s26
        %p1550 = scmp.lt.s32.totalorder %s25, 1
        %s1551 = scalar_select %p1550, %s25, 1
        %p1552 = scmp.lt.s32.totalorder %s1549, 1
        %s1553 = scalar_select %p1552, %s1549, 1
        %s1554 = smul.addr %s1551, 2
        %s1555 = sadd.s32 %s1553, %s1554
        %s1556 = scalar_lea.vmem %s6, %s1555
      $region64: #{_lambda_.1} parent=55 // pred_fallthru
        _
      // Predicated region
      $region65: #{_lambda_.1} parent=55 // pred_check
        %p1557 = pneg %p232
      $region66: #{_lambda_.1} parent=55 // pred_check_branch
        %1559 = sbr.rel (%p1557) target = $region68
      $region67: #{_lambda_.1} parent=55 // pred_region
        %s1560 = smul.u32 2, %s26
        %p1561 = scmp.lt.s32.totalorder %s25, 1
        %s1562 = scalar_select %p1561, %s25, 1
        %p1563 = scmp.lt.s32.totalorder %s1560, 1
        %s1564 = scalar_select %p1563, %s1560, 1
        %s1565 = smul.addr %s1562, 2
        %s1566 = sadd.s32 %s1564, %s1565
        %s1567 = scalar_lea.vmem %s7, %s1566
      $region68: #{_lambda_.1} parent=55 // pred_fallthru
        _
    $region56: #{_lambda_.1} parent=5 // pred_fallthru
      _
  $region6: #{_lambda_.1} parent=0 // loop_footer
    %s18 = sadd.s32 1, %s14
  $region7: #{_lambda_.1} parent=0 // loop_footer_branch
    %13 = sbr.rel target = $region3
  $region8: #{_lambda_.1} parent=0 // loop_exit
    _

</llo_original>
